<compile_context>
chip_gen: v7x
topology: tpu7x:2x2x1
jax: 0.10.0
libtpu: 0.0.40
codegen_flags: <defaults>
</compile_context>

<pallas_src>
import functools

import jax
import jax.numpy as jnp
from jax import lax
from jax.experimental import pallas as pl
from jax.experimental.pallas import tpu as pltpu


# ----------------------------- Pallas kernel --------------------------------

def diffusion_loss_kernel(n_valid,
                          x0_ref, noise_ref, a_ref, oma_ref, bt_ref,
                          w1_ref, w2_ref, b2_ref, loss_ref):
    """Single gridless invocation; every operand fully resident in VMEM.

    x0_ref, noise_ref : [Bp, D] f32   zero-padded to Bp >= 8 rows
    a_ref, oma_ref    : [Bp, 1] f32   sqrt(alphas_bar[t]), sqrt(1-alphas_bar[t])
    bt_ref            : [Bp, H] f32   b1 + time_embedding[t]   (fused host-side)
    w1_ref            : [D, H]  bf16
    w2_ref            : [H, D]  bf16
    b2_ref            : [1, D]  f32
    loss_ref          : [1, 1]  f32   SMEM scalar output
    n_valid           : Python int, number of real (unpadded) batch rows
    """
    x0 = x0_ref[...]
    noise = noise_ref[...]

    # q(x_t | x_0): per-row scalar broadcast (torch `extract`), f32 on the VPU.
    x_t = a_ref[...] * x0 + oma_ref[...] * noise

    # eps_theta = MLP(x_t, t): bf16 MXU matmuls with f32 accumulation.
    h = jnp.dot(x_t.astype(jnp.bfloat16), w1_ref[...],
                preferred_element_type=jnp.float32)
    h = jnp.maximum(h + bt_ref[...], 0.0)
    eps = jnp.dot(h.astype(jnp.bfloat16), w2_ref[...],
                  preferred_element_type=jnp.float32) + b2_ref[...]

    # F.mse_loss(noise, eps_theta), 'mean' over the real rows only.
    diff = noise - eps
    row_id = lax.broadcasted_iota(jnp.int32, diff.shape, 0)
    sq = jnp.where(row_id < n_valid, diff * diff, 0.0)
    inv_n = 1.0 / (n_valid * diff.shape[1])
    loss_ref[0, 0] = jnp.sum(sq) * inv_n


def diffusion_loss_pallas(n_valid, x0_f, noise_f, a_t, oma_t, bt, w1, w2, b2):
    vmem = pl.BlockSpec(memory_space=pltpu.MemorySpace.VMEM)
    smem = pl.BlockSpec(memory_space=pltpu.MemorySpace.SMEM)
    return pl.pallas_call(
        functools.partial(diffusion_loss_kernel, n_valid),
        out_shape=jax.ShapeDtypeStruct((1, 1), jnp.float32),
        in_specs=[vmem] * 8,
        out_specs=smem,
    )(x0_f, noise_f, a_t, oma_t, bt, w1, w2, b2)


# ------------------------------- JAX glue ------------------------------------

def make_schedule(T):
    # Matches torch: betas = linspace(1e-4, 0.02, T+1); alphas_bar via cumsum(log).exp()
    betas = jnp.linspace(0.0001, 0.02, T + 1, dtype=jnp.float32)
    alphas = 1.0 - betas
    alphas_bar = jnp.exp(jnp.cumsum(jnp.log(alphas)))
    return betas, alphas, alphas_bar


def init_model_params(key, D, H, T):
    k1, k2, k3, k4, k5 = jax.random.split(key, 5)
    # Weights stored in bf16: halves the weight DMA and feeds the MXU directly.
    w1 = (jax.random.normal(k1, (D, H), jnp.float32) / jnp.sqrt(D)).astype(jnp.bfloat16)
    w2 = (jax.random.normal(k2, (H, D), jnp.float32) / jnp.sqrt(H)).astype(jnp.bfloat16)
    b1 = 0.1 * jax.random.normal(k3, (1, H), jnp.float32)
    b2 = 0.1 * jax.random.normal(k4, (1, D), jnp.float32)
    temb_table = 0.1 * jax.random.normal(k5, (T + 1, H), jnp.float32)
    return w1, w2, b1, b2, temb_table


def denoising_diffusion_forward(key, x0, params, alphas_bar, *, T):
    """Full forward(x0) -> scalar MSE loss, mirroring the PyTorch module."""
    B = x0.shape[0]
    D = x0.shape[1] * x0.shape[2] * x0.shape[3]
    w1, w2, b1, b2, temb_table = params

    kt, kn = jax.random.split(key)
    t = jax.random.randint(kt, (B,), 1, T)                  # torch.randint(1, T, (B,))
    noise = jax.random.normal(kn, x0.shape, jnp.float32)    # torch.randn_like(x0)

    # extract(sqrt(alphas_bar), t, x0) / extract(sqrt(1 - alphas_bar), t, x0)
    a_t = jnp.sqrt(alphas_bar)[t].reshape(B, 1)
    oma_t = jnp.sqrt(1.0 - alphas_bar)[t].reshape(B, 1)
    bt = temb_table[t] + b1                                  # fused bias + temb, [B, H]

    x0_f = x0.reshape(B, D)
    noise_f = noise.reshape(B, D)

    # Pad the batch to a multiple of 8 sublane rows for the MXU LHS;
    # padded rows are masked out of the mean inside the kernel.
    Bp = max(8, -(-B // 8) * 8)
    pad = ((0, Bp - B), (0, 0))
    loss = diffusion_loss_pallas(
        B,
        jnp.pad(x0_f, pad), jnp.pad(noise_f, pad),
        jnp.pad(a_t, pad), jnp.pad(oma_t, pad), jnp.pad(bt, pad),
        w1, w2, b2)
    return loss[0, 0], (x0_f, noise_f, a_t, oma_t, bt)


def reference_loss(x0_f, noise_f, a_t, oma_t, bt, w1, w2, b2):
    """Pure-JAX f32 reference of the same computation (bf16-rounded weights)."""
    x_t = a_t * x0_f + oma_t * noise_f
    h = jnp.maximum(x_t @ w1.astype(jnp.float32) + bt, 0.0)
    eps = h @ w2.astype(jnp.float32) + b2
    return jnp.mean((noise_f - eps) ** 2)


# --------------------------------- main --------------------------------------

if __name__ == "__main__":
    T = 1000
    B, C, H_img, W_img = 2, 4, 16, 16          # small image, D = 1024
    D = C * H_img * W_img
    H_hidden = 256                             # fills the 256-wide MXU on v6e/v7x

    root = jax.random.PRNGKey(0)
    k_x, k_params, k_fwd = jax.random.split(root, 3)

    x0 = jax.random.normal(k_x, (B, C, H_img, W_img), jnp.float32)
    params = init_model_params(k_params, D, H_hidden, T)
    _, _, alphas_bar = make_schedule(T)

    fwd = jax.jit(functools.partial(denoising_diffusion_forward, T=T))
    loss, aux = fwd(k_fwd, x0, params, alphas_bar)
    loss = jax.block_until_ready(loss)

    # Cross-check against a pure-JAX f32 reference (loose tolerance: the kernel
    # uses bf16 MXU operands with f32 accumulation, as recommended).
    ref = reference_loss(*aux, params[0], params[1], params[3])
    assert jnp.allclose(loss, ref, rtol=2e-2, atol=2e-2), (loss, ref)

    print("KERNEL_OK")
</pallas_src>

<mosaic_0001>
module attributes {stable_mosaic.version = 11 : i64} {
  func.func @diffusion_loss_kernel(%arg0: memref<8x1024xf32, #tpu.memory_space<vmem>>, %arg1: memref<8x1024xf32, #tpu.memory_space<vmem>>, %arg2: memref<8x1xf32, #tpu.memory_space<vmem>>, %arg3: memref<8x1xf32, #tpu.memory_space<vmem>>, %arg4: memref<8x256xf32, #tpu.memory_space<vmem>>, %arg5: memref<1024x256xbf16, #tpu.memory_space<vmem>>, %arg6: memref<256x1024xbf16, #tpu.memory_space<vmem>>, %arg7: memref<1x1024xf32, #tpu.memory_space<vmem>>, %arg8: memref<1x1xf32, #tpu.memory_space<smem>>) attributes {dimension_semantics = [], scalar_prefetch = 0 : i64, scratch_operands = 0 : i64, tpu.core_type = #tpu.core_type<tc>} {
    %c0 = arith.constant 0 : index
    %c0_0 = arith.constant 0 : index
    %0 = vector.load %arg0[%c0, %c0_0] : memref<8x1024xf32, #tpu.memory_space<vmem>>, vector<8x1024xf32>
    %c0_1 = arith.constant 0 : index
    %c0_2 = arith.constant 0 : index
    %1 = vector.load %arg1[%c0_1, %c0_2] : memref<8x1024xf32, #tpu.memory_space<vmem>>, vector<8x1024xf32>
    %c0_3 = arith.constant 0 : index
    %c0_4 = arith.constant 0 : index
    %2 = vector.load %arg2[%c0_3, %c0_4] : memref<8x1xf32, #tpu.memory_space<vmem>>, vector<8x1xf32>
    %3 = vector.broadcast %2 : vector<8x1xf32> to vector<8x1024xf32>
    %4 = arith.mulf %3, %0 : vector<8x1024xf32>
    %c0_5 = arith.constant 0 : index
    %c0_6 = arith.constant 0 : index
    %5 = vector.load %arg3[%c0_5, %c0_6] : memref<8x1xf32, #tpu.memory_space<vmem>>, vector<8x1xf32>
    %6 = vector.broadcast %5 : vector<8x1xf32> to vector<8x1024xf32>
    %7 = arith.mulf %6, %1 : vector<8x1024xf32>
    %8 = arith.addf %4, %7 : vector<8x1024xf32>
    %9 = arith.truncf %8 : vector<8x1024xf32> to vector<8x1024xbf16>
    %c0_7 = arith.constant 0 : index
    %c0_8 = arith.constant 0 : index
    %10 = vector.load %arg5[%c0_7, %c0_8] : memref<1024x256xbf16, #tpu.memory_space<vmem>>, vector<1024x256xbf16>
    %cst = arith.constant dense<0.000000e+00> : vector<8x256xf32>
    %11 = tpu.matmul %9, %10, %cst {dimension_numbers = #tpu.dot_dimension_numbers<[1], [0], [0], [1], [0, 0, 1, 1], [], []>} : vector<8x1024xbf16>, vector<1024x256xbf16>, vector<8x256xf32> -> vector<8x256xf32>
    %c0_9 = arith.constant 0 : index
    %c0_10 = arith.constant 0 : index
    %12 = vector.load %arg4[%c0_9, %c0_10] : memref<8x256xf32, #tpu.memory_space<vmem>>, vector<8x256xf32>
    %13 = arith.addf %11, %12 : vector<8x256xf32>
    %cst_11 = arith.constant 0.000000e+00 : f32
    %14 = vector.broadcast %cst_11 : f32 to vector<8x256xf32>
    %15 = arith.maximumf %13, %14 : vector<8x256xf32>
    %16 = arith.truncf %15 : vector<8x256xf32> to vector<8x256xbf16>
    %c0_12 = arith.constant 0 : index
    %c0_13 = arith.constant 0 : index
    %17 = vector.load %arg6[%c0_12, %c0_13] : memref<256x1024xbf16, #tpu.memory_space<vmem>>, vector<256x1024xbf16>
    %cst_14 = arith.constant dense<0.000000e+00> : vector<8x1024xf32>
    %18 = tpu.matmul %16, %17, %cst_14 {dimension_numbers = #tpu.dot_dimension_numbers<[1], [0], [0], [1], [0, 0, 1, 1], [], []>} : vector<8x256xbf16>, vector<256x1024xbf16>, vector<8x1024xf32> -> vector<8x1024xf32>
    %c0_15 = arith.constant 0 : index
    %c0_16 = arith.constant 0 : index
    %19 = vector.load %arg7[%c0_15, %c0_16] : memref<1x1024xf32, #tpu.memory_space<vmem>>, vector<1x1024xf32>
    %20 = vector.broadcast %19 : vector<1x1024xf32> to vector<8x1024xf32>
    %21 = arith.addf %18, %20 : vector<8x1024xf32>
    %22 = arith.subf %1, %21 : vector<8x1024xf32>
    %23 = tpu.iota {dimensions = array<i32: 0>} : vector<8x1024xi32>
    %c2_i32 = arith.constant 2 : i32
    %24 = vector.broadcast %c2_i32 : i32 to vector<8x1024xi32>
    %25 = arith.cmpi slt, %23, %24 : vector<8x1024xi32>
    %26 = arith.mulf %22, %22 : vector<8x1024xf32>
    %cst_17 = arith.constant 0.000000e+00 : f32
    %27 = vector.broadcast %cst_17 : f32 to vector<8x1024xf32>
    %28 = arith.select %25, %26, %27 : vector<8x1024xi1>, vector<8x1024xf32>
    %29 = vector.shape_cast %28 : vector<8x1024xf32> to vector<1x8x1024xf32>
    %cst_18 = arith.constant dense<0.000000e+00> : vector<1xf32>
    %30 = vector.multi_reduction <add>, %29, %cst_18 [1, 2] : vector<1x8x1024xf32> to vector<1xf32>
    %31 = vector.shape_cast %30 : vector<1xf32> to vector<1x1x1xf32>
    %32 = vector.extract %31[0, 0, 0] : f32 from vector<1x1x1xf32>
    %cst_19 = arith.constant 4.8828125E-4 : f32
    %33 = arith.mulf %32, %cst_19 : f32
    %c0_20 = arith.constant 0 : index
    %c0_21 = arith.constant 0 : index
    %34 = memref.load %arg8[%c0_20, %c0_21] : memref<1x1xf32, #tpu.memory_space<smem>>
    memref.store %33, %arg8[%c0_20, %c0_21] : memref<1x1xf32, #tpu.memory_space<smem>>
    return
  }
}

</mosaic_0001>

<llo_original>
// kernel: denoising_diffusion_forward.21
$region0: #{denoising_diffusion_forward.21}
  #allocation0 [shape = 'u32[]', space=smem, size = 0x4, offset = 0x4, fixed_abs, tag = 'smem constant byte address 0x4 - core index']
  #allocation1 [shape = 'u32[144,128]{1,0:T(1,128)}', space=vmem, size = 0x12000, scoped, tag = 'internal scratch']
  %s0 = inlined_call_operand.vmem [shape: f32[8,1024], index: 0, kind: input, shape index: {}]
  %s1 = inlined_call_operand.vmem [shape: f32[8,1024], index: 1, kind: input, shape index: {}]
  %s2 = inlined_call_operand.vmem [shape: f32[8,1], index: 2, kind: input, shape index: {}]
  %s3 = inlined_call_operand.vmem [shape: f32[8,1], index: 3, kind: input, shape index: {}]
  %s4 = inlined_call_operand.vmem [shape: f32[8,256], index: 4, kind: input, shape index: {}]
  %s5 = inlined_call_operand.vmem [shape: bf16[1024,256], index: 5, kind: input, shape index: {}]
  %s6 = inlined_call_operand.vmem [shape: bf16[256,1024], index: 6, kind: input, shape index: {}]
  %s7 = inlined_call_operand.vmem [shape: f32[1,1024], index: 7, kind: input, shape index: {}]
  %s8 = inlined_call_operand.hbm [shape: f32[1,1], index: 8, kind: output, shape index: {}]
  %s9 = sld [smem:[#allocation0]]
  $region42: #{denoising_diffusion_forward.21} parent=0
    _
  %s11 = ssub.s32 1, %s9
  %s12 = scalar_select 0, %s11, %s9
  $region1: #{denoising_diffusion_forward.21} parent=0
    #allocation2 [shape = 'u8[512]{0}', space=smem, size = 0x200, scoped, tag = 'output window, operand 0, single buffered']
    #allocation3 [shape = 's32[1]{0}', space=sflag, size = 0x4, scoped, tag = 'scoped memory for denoising_diffusion_forward.21']
    %13 = vsyncpa [#allocation3], 0
    // Predicated region
    $region2: #{denoising_diffusion_forward.21} parent=1 // pred_check
      _
    $region3: #{denoising_diffusion_forward.21} parent=1 // pred_check_branch
      %15 = sbr.rel (0) target = $region5
    $region4: #{denoising_diffusion_forward.21} parent=1 // pred_region
      _
    $region5: #{denoising_diffusion_forward.21} parent=1 // pred_fallthru
      _
    // Predicated region
    $region6: #{denoising_diffusion_forward.21} parent=1 // pred_check
      _
    $region7: #{denoising_diffusion_forward.21} parent=1 // pred_check_branch
      %17 = sbr.rel (0) target = $region9
    $region8: #{denoising_diffusion_forward.21} parent=1 // pred_region
      _
    $region9: #{denoising_diffusion_forward.21} parent=1 // pred_fallthru
      _
    // Predicated region
    $region10: #{denoising_diffusion_forward.21} parent=1 // pred_check
      _
    $region11: #{denoising_diffusion_forward.21} parent=1 // pred_check_branch
      %19 = sbr.rel (0) target = $region13
    $region12: #{denoising_diffusion_forward.21} parent=1 // pred_region
      _
    $region13: #{denoising_diffusion_forward.21} parent=1 // pred_fallthru
      _
    // Predicated region
    $region14: #{denoising_diffusion_forward.21} parent=1 // pred_check
      _
    $region15: #{denoising_diffusion_forward.21} parent=1 // pred_check_branch
      %21 = sbr.rel (0) target = $region17
    $region16: #{denoising_diffusion_forward.21} parent=1 // pred_region
      _
    $region17: #{denoising_diffusion_forward.21} parent=1 // pred_fallthru
      _
    // Predicated region
    $region18: #{denoising_diffusion_forward.21} parent=1 // pred_check
      _
    $region19: #{denoising_diffusion_forward.21} parent=1 // pred_check_branch
      %23 = sbr.rel (0) target = $region21
    $region20: #{denoising_diffusion_forward.21} parent=1 // pred_region
      _
    $region21: #{denoising_diffusion_forward.21} parent=1 // pred_fallthru
      _
    // Predicated region
    $region22: #{denoising_diffusion_forward.21} parent=1 // pred_check
      _
    $region23: #{denoising_diffusion_forward.21} parent=1 // pred_check_branch
      %25 = sbr.rel (0) target = $region25
    $region24: #{denoising_diffusion_forward.21} parent=1 // pred_region
      _
    $region25: #{denoising_diffusion_forward.21} parent=1 // pred_fallthru
      _
    // Predicated region
    $region26: #{denoising_diffusion_forward.21} parent=1 // pred_check
      _
    $region27: #{denoising_diffusion_forward.21} parent=1 // pred_check_branch
      %27 = sbr.rel (0) target = $region29
    $region28: #{denoising_diffusion_forward.21} parent=1 // pred_region
      _
    $region29: #{denoising_diffusion_forward.21} parent=1 // pred_fallthru
      _
    // Predicated region
    $region30: #{denoising_diffusion_forward.21} parent=1 // pred_check
      _
    $region31: #{denoising_diffusion_forward.21} parent=1 // pred_check_branch
      %29 = sbr.rel (0) target = $region33
    $region32: #{denoising_diffusion_forward.21} parent=1 // pred_region
      _
    $region33: #{denoising_diffusion_forward.21} parent=1 // pred_fallthru
      _
    %v30 = vld [vmem:[%s0] sm:$0xff]
    %v31 = vld [vmem:[%s0 + $0x8] sm:$0xff]
    %v32 = vld [vmem:[%s0 + $0x10] sm:$0xff]
    %v33 = vld [vmem:[%s0 + $0x18] sm:$0xff]
    %v34 = vld [vmem:[%s0 + $0x20] sm:$0xff]
    %v35 = vld [vmem:[%s0 + $0x28] sm:$0xff]
    %v36 = vld [vmem:[%s0 + $0x30] sm:$0xff]
    %v37 = vld [vmem:[%s0 + $0x38] sm:$0xff]
    %v38 = vld [vmem:[%s1] sm:$0xff]
    %v39 = vld [vmem:[%s1 + $0x8] sm:$0xff]
    %v40 = vld [vmem:[%s1 + $0x10] sm:$0xff]
    %v41 = vld [vmem:[%s1 + $0x18] sm:$0xff]
    %v42 = vld [vmem:[%s1 + $0x20] sm:$0xff]
    %v43 = vld [vmem:[%s1 + $0x28] sm:$0xff]
    %v44 = vld [vmem:[%s1 + $0x30] sm:$0xff]
    %v45 = vld [vmem:[%s1 + $0x38] sm:$0xff]
    %v46 = vld [vmem:[%s2] sm:$0xff]
    %48 = vset.pattern.permute.xlu0 0
    %49 = vperm.xlu0 %48, %v46
    %v50 = vpop.permute.xlu0 %49
    %v52 = vmul.f32 %v50, %v30
    %v53 = vmul.f32 %v50, %v31
    %v54 = vmul.f32 %v50, %v32
    %v55 = vmul.f32 %v50, %v33
    %v56 = vmul.f32 %v50, %v34
    %v57 = vmul.f32 %v50, %v35
    %v58 = vmul.f32 %v50, %v36
    %v59 = vmul.f32 %v50, %v37
    %v60 = vld [vmem:[%s3] sm:$0xff]
    %62 = vset.pattern.permute.xlu0 0
    %63 = vperm.xlu0 %62, %v60
    %v64 = vpop.permute.xlu0 %63
    %v66 = vmul.f32 %v64, %v38
    %v67 = vmul.f32 %v64, %v39
    %v68 = vmul.f32 %v64, %v40
    %v69 = vmul.f32 %v64, %v41
    %v70 = vmul.f32 %v64, %v42
    %v71 = vmul.f32 %v64, %v43
    %v72 = vmul.f32 %v64, %v44
    %v73 = vmul.f32 %v64, %v45
    %v74 = vadd.f32 %v52, %v66
    %v75 = vadd.f32 %v53, %v67
    %v76 = vadd.f32 %v54, %v68
    %v77 = vadd.f32 %v55, %v69
    %v78 = vadd.f32 %v56, %v70
    %v79 = vadd.f32 %v57, %v71
    %v80 = vadd.f32 %v58, %v72
    %v81 = vadd.f32 %v59, %v73
    %v82 = vpack.c.bf16 %v74, %v74
    %v83 = vpack.c.bf16 %v75, %v75
    %v84 = vpack.c.bf16 %v76, %v76
    %v85 = vpack.c.bf16 %v77, %v77
    %v86 = vpack.c.bf16 %v78, %v78
    %v87 = vpack.c.bf16 %v79, %v79
    %v88 = vpack.c.bf16 %v80, %v80
    %v89 = vpack.c.bf16 %v81, %v81
    %v90 = vld [vmem:[%s5] sm:$0xff]
    %v91 = vld [vmem:[%s5 + $0x8] sm:$0xff]
    %v92 = vld [vmem:[%s5 + $0x10] sm:$0xff]
    %v93 = vld [vmem:[%s5 + $0x18] sm:$0xff]
    %v94 = vld [vmem:[%s5 + $0x20] sm:$0xff]
    %v95 = vld [vmem:[%s5 + $0x28] sm:$0xff]
    %v96 = vld [vmem:[%s5 + $0x30] sm:$0xff]
    %v97 = vld [vmem:[%s5 + $0x38] sm:$0xff]
    %v98 = vld [vmem:[%s5 + $0x40] sm:$0xff]
    %v99 = vld [vmem:[%s5 + $0x48] sm:$0xff]
    %v100 = vld [vmem:[%s5 + $0x50] sm:$0xff]
    %v101 = vld [vmem:[%s5 + $0x58] sm:$0xff]
    %v102 = vld [vmem:[%s5 + $0x60] sm:$0xff]
    %v103 = vld [vmem:[%s5 + $0x68] sm:$0xff]
    %v104 = vld [vmem:[%s5 + $0x70] sm:$0xff]
    %v105 = vld [vmem:[%s5 + $0x78] sm:$0xff]
    %v106 = vld [vmem:[%s5 + $0x80] sm:$0xff]
    %v107 = vld [vmem:[%s5 + $0x88] sm:$0xff]
    %v108 = vld [vmem:[%s5 + $0x90] sm:$0xff]
    %v109 = vld [vmem:[%s5 + $0x98] sm:$0xff]
    %v110 = vld [vmem:[%s5 + $0xa0] sm:$0xff]
    %v111 = vld [vmem:[%s5 + $0xa8] sm:$0xff]
    %v112 = vld [vmem:[%s5 + $0xb0] sm:$0xff]
    %v113 = vld [vmem:[%s5 + $0xb8] sm:$0xff]
    %v114 = vld [vmem:[%s5 + $0xc0] sm:$0xff]
    %v115 = vld [vmem:[%s5 + $0xc8] sm:$0xff]
    %v116 = vld [vmem:[%s5 + $0xd0] sm:$0xff]
    %v117 = vld [vmem:[%s5 + $0xd8] sm:$0xff]
    %v118 = vld [vmem:[%s5 + $0xe0] sm:$0xff]
    %v119 = vld [vmem:[%s5 + $0xe8] sm:$0xff]
    %v120 = vld [vmem:[%s5 + $0xf0] sm:$0xff]
    %v121 = vld [vmem:[%s5 + $0xf8] sm:$0xff]
    %v122 = vld [vmem:[%s5 + $0x100] sm:$0xff]
    %v123 = vld [vmem:[%s5 + $0x108] sm:$0xff]
    %v124 = vld [vmem:[%s5 + $0x110] sm:$0xff]
    %v125 = vld [vmem:[%s5 + $0x118] sm:$0xff]
    %v126 = vld [vmem:[%s5 + $0x120] sm:$0xff]
    %v127 = vld [vmem:[%s5 + $0x128] sm:$0xff]
    %v128 = vld [vmem:[%s5 + $0x130] sm:$0xff]
    %v129 = vld [vmem:[%s5 + $0x138] sm:$0xff]
    %v130 = vld [vmem:[%s5 + $0x140] sm:$0xff]
    %v131 = vld [vmem:[%s5 + $0x148] sm:$0xff]
    %v132 = vld [vmem:[%s5 + $0x150] sm:$0xff]
    %v133 = vld [vmem:[%s5 + $0x158] sm:$0xff]
    %v134 = vld [vmem:[%s5 + $0x160] sm:$0xff]
    %v135 = vld [vmem:[%s5 + $0x168] sm:$0xff]
    %v136 = vld [vmem:[%s5 + $0x170] sm:$0xff]
    %v137 = vld [vmem:[%s5 + $0x178] sm:$0xff]
    %v138 = vld [vmem:[%s5 + $0x180] sm:$0xff]
    %v139 = vld [vmem:[%s5 + $0x188] sm:$0xff]
    %v140 = vld [vmem:[%s5 + $0x190] sm:$0xff]
    %v141 = vld [vmem:[%s5 + $0x198] sm:$0xff]
    %v142 = vld [vmem:[%s5 + $0x1a0] sm:$0xff]
    %v143 = vld [vmem:[%s5 + $0x1a8] sm:$0xff]
    %v144 = vld [vmem:[%s5 + $0x1b0] sm:$0xff]
    %v145 = vld [vmem:[%s5 + $0x1b8] sm:$0xff]
    %v146 = vld [vmem:[%s5 + $0x1c0] sm:$0xff]
    %v147 = vld [vmem:[%s5 + $0x1c8] sm:$0xff]
    %v148 = vld [vmem:[%s5 + $0x1d0] sm:$0xff]
    %v149 = vld [vmem:[%s5 + $0x1d8] sm:$0xff]
    %v150 = vld [vmem:[%s5 + $0x1e0] sm:$0xff]
    %v151 = vld [vmem:[%s5 + $0x1e8] sm:$0xff]
    %v152 = vld [vmem:[%s5 + $0x1f0] sm:$0xff]
    %v153 = vld [vmem:[%s5 + $0x1f8] sm:$0xff]
    %v154 = vld [vmem:[%s5 + $0x200] sm:$0xff]
    %v155 = vld [vmem:[%s5 + $0x208] sm:$0xff]
    %v156 = vld [vmem:[%s5 + $0x210] sm:$0xff]
    %v157 = vld [vmem:[%s5 + $0x218] sm:$0xff]
    %v158 = vld [vmem:[%s5 + $0x220] sm:$0xff]
    %v159 = vld [vmem:[%s5 + $0x228] sm:$0xff]
    %v160 = vld [vmem:[%s5 + $0x230] sm:$0xff]
    %v161 = vld [vmem:[%s5 + $0x238] sm:$0xff]
    %v162 = vld [vmem:[%s5 + $0x240] sm:$0xff]
    %v163 = vld [vmem:[%s5 + $0x248] sm:$0xff]
    %v164 = vld [vmem:[%s5 + $0x250] sm:$0xff]
    %v165 = vld [vmem:[%s5 + $0x258] sm:$0xff]
    %v166 = vld [vmem:[%s5 + $0x260] sm:$0xff]
    %v167 = vld [vmem:[%s5 + $0x268] sm:$0xff]
    %v168 = vld [vmem:[%s5 + $0x270] sm:$0xff]
    %v169 = vld [vmem:[%s5 + $0x278] sm:$0xff]
    %v170 = vld [vmem:[%s5 + $0x280] sm:$0xff]
    %v171 = vld [vmem:[%s5 + $0x288] sm:$0xff]
    %v172 = vld [vmem:[%s5 + $0x290] sm:$0xff]
    %v173 = vld [vmem:[%s5 + $0x298] sm:$0xff]
    %v174 = vld [vmem:[%s5 + $0x2a0] sm:$0xff]
    %v175 = vld [vmem:[%s5 + $0x2a8] sm:$0xff]
    %v176 = vld [vmem:[%s5 + $0x2b0] sm:$0xff]
    %v177 = vld [vmem:[%s5 + $0x2b8] sm:$0xff]
    %v178 = vld [vmem:[%s5 + $0x2c0] sm:$0xff]
    %v179 = vld [vmem:[%s5 + $0x2c8] sm:$0xff]
    %v180 = vld [vmem:[%s5 + $0x2d0] sm:$0xff]
    %v181 = vld [vmem:[%s5 + $0x2d8] sm:$0xff]
    %v182 = vld [vmem:[%s5 + $0x2e0] sm:$0xff]
    %v183 = vld [vmem:[%s5 + $0x2e8] sm:$0xff]
    %v184 = vld [vmem:[%s5 + $0x2f0] sm:$0xff]
    %v185 = vld [vmem:[%s5 + $0x2f8] sm:$0xff]
    %v186 = vld [vmem:[%s5 + $0x300] sm:$0xff]
    %v187 = vld [vmem:[%s5 + $0x308] sm:$0xff]
    %v188 = vld [vmem:[%s5 + $0x310] sm:$0xff]
    %v189 = vld [vmem:[%s5 + $0x318] sm:$0xff]
    %v190 = vld [vmem:[%s5 + $0x320] sm:$0xff]
    %v191 = vld [vmem:[%s5 + $0x328] sm:$0xff]
    %v192 = vld [vmem:[%s5 + $0x330] sm:$0xff]
    %v193 = vld [vmem:[%s5 + $0x338] sm:$0xff]
    %v194 = vld [vmem:[%s5 + $0x340] sm:$0xff]
    %v195 = vld [vmem:[%s5 + $0x348] sm:$0xff]
    %v196 = vld [vmem:[%s5 + $0x350] sm:$0xff]
    %v197 = vld [vmem:[%s5 + $0x358] sm:$0xff]
    %v198 = vld [vmem:[%s5 + $0x360] sm:$0xff]
    %v199 = vld [vmem:[%s5 + $0x368] sm:$0xff]
    %v200 = vld [vmem:[%s5 + $0x370] sm:$0xff]
    %v201 = vld [vmem:[%s5 + $0x378] sm:$0xff]
    %v202 = vld [vmem:[%s5 + $0x380] sm:$0xff]
    %v203 = vld [vmem:[%s5 + $0x388] sm:$0xff]
    %v204 = vld [vmem:[%s5 + $0x390] sm:$0xff]
    %v205 = vld [vmem:[%s5 + $0x398] sm:$0xff]
    %v206 = vld [vmem:[%s5 + $0x3a0] sm:$0xff]
    %v207 = vld [vmem:[%s5 + $0x3a8] sm:$0xff]
    %v208 = vld [vmem:[%s5 + $0x3b0] sm:$0xff]
    %v209 = vld [vmem:[%s5 + $0x3b8] sm:$0xff]
    %v210 = vld [vmem:[%s5 + $0x3c0] sm:$0xff]
    %v211 = vld [vmem:[%s5 + $0x3c8] sm:$0xff]
    %v212 = vld [vmem:[%s5 + $0x3d0] sm:$0xff]
    %v213 = vld [vmem:[%s5 + $0x3d8] sm:$0xff]
    %v214 = vld [vmem:[%s5 + $0x3e0] sm:$0xff]
    %v215 = vld [vmem:[%s5 + $0x3e8] sm:$0xff]
    %v216 = vld [vmem:[%s5 + $0x3f0] sm:$0xff]
    %v217 = vld [vmem:[%s5 + $0x3f8] sm:$0xff]
    %v218 = vld [vmem:[%s4] sm:$0xff]
    %v219 = vld [vmem:[%s4 + $0x8] sm:$0xff]
    %v348 = vunpack.c.l.b16 %v90
    %v349 = vunpack.c.h.b16 %v90
    %v350 = vunpack.c.l.b16 %v91
    %v351 = vunpack.c.h.b16 %v91
    %v352 = vunpack.c.l.b16 %v92
    %v353 = vunpack.c.h.b16 %v92
    %v354 = vunpack.c.l.b16 %v93
    %v355 = vunpack.c.h.b16 %v93
    %v356 = vunpack.c.l.b16 %v94
    %v357 = vunpack.c.h.b16 %v94
    %v358 = vunpack.c.l.b16 %v95
    %v359 = vunpack.c.h.b16 %v95
    %v360 = vunpack.c.l.b16 %v96
    %v361 = vunpack.c.h.b16 %v96
    %v362 = vunpack.c.l.b16 %v97
    %v363 = vunpack.c.h.b16 %v97
    %v364 = vunpack.c.l.b16 %v98
    %v365 = vunpack.c.h.b16 %v98
    %v366 = vunpack.c.l.b16 %v99
    %v367 = vunpack.c.h.b16 %v99
    %v368 = vunpack.c.l.b16 %v100
    %v369 = vunpack.c.h.b16 %v100
    %v370 = vunpack.c.l.b16 %v101
    %v371 = vunpack.c.h.b16 %v101
    %v372 = vunpack.c.l.b16 %v102
    %v373 = vunpack.c.h.b16 %v102
    %v374 = vunpack.c.l.b16 %v103
    %v375 = vunpack.c.h.b16 %v103
    %v376 = vunpack.c.l.b16 %v104
    %v377 = vunpack.c.h.b16 %v104
    %v378 = vunpack.c.l.b16 %v105
    %v379 = vunpack.c.h.b16 %v105
    %v380 = vunpack.c.l.b16 %v106
    %v381 = vunpack.c.h.b16 %v106
    %v382 = vunpack.c.l.b16 %v107
    %v383 = vunpack.c.h.b16 %v107
    %v384 = vunpack.c.l.b16 %v108
    %v385 = vunpack.c.h.b16 %v108
    %v386 = vunpack.c.l.b16 %v109
    %v387 = vunpack.c.h.b16 %v109
    %v388 = vunpack.c.l.b16 %v110
    %v389 = vunpack.c.h.b16 %v110
    %v390 = vunpack.c.l.b16 %v111
    %v391 = vunpack.c.h.b16 %v111
    %v392 = vunpack.c.l.b16 %v112
    %v393 = vunpack.c.h.b16 %v112
    %v394 = vunpack.c.l.b16 %v113
    %v395 = vunpack.c.h.b16 %v113
    %v396 = vunpack.c.l.b16 %v114
    %v397 = vunpack.c.h.b16 %v114
    %v398 = vunpack.c.l.b16 %v115
    %v399 = vunpack.c.h.b16 %v115
    %v400 = vunpack.c.l.b16 %v116
    %v401 = vunpack.c.h.b16 %v116
    %v402 = vunpack.c.l.b16 %v117
    %v403 = vunpack.c.h.b16 %v117
    %v404 = vunpack.c.l.b16 %v118
    %v405 = vunpack.c.h.b16 %v118
    %v406 = vunpack.c.l.b16 %v119
    %v407 = vunpack.c.h.b16 %v119
    %v408 = vunpack.c.l.b16 %v120
    %v409 = vunpack.c.h.b16 %v120
    %v410 = vunpack.c.l.b16 %v121
    %v411 = vunpack.c.h.b16 %v121
    %v412 = vunpack.c.l.b16 %v122
    %v413 = vunpack.c.h.b16 %v122
    %v414 = vunpack.c.l.b16 %v123
    %v415 = vunpack.c.h.b16 %v123
    %v416 = vunpack.c.l.b16 %v124
    %v417 = vunpack.c.h.b16 %v124
    %v418 = vunpack.c.l.b16 %v125
    %v419 = vunpack.c.h.b16 %v125
    %v420 = vunpack.c.l.b16 %v126
    %v421 = vunpack.c.h.b16 %v126
    %v422 = vunpack.c.l.b16 %v127
    %v423 = vunpack.c.h.b16 %v127
    %v424 = vunpack.c.l.b16 %v128
    %v425 = vunpack.c.h.b16 %v128
    %v426 = vunpack.c.l.b16 %v129
    %v427 = vunpack.c.h.b16 %v129
    %v428 = vunpack.c.l.b16 %v130
    %v429 = vunpack.c.h.b16 %v130
    %v430 = vunpack.c.l.b16 %v131
    %v431 = vunpack.c.h.b16 %v131
    %v432 = vunpack.c.l.b16 %v132
    %v433 = vunpack.c.h.b16 %v132
    %v434 = vunpack.c.l.b16 %v133
    %v435 = vunpack.c.h.b16 %v133
    %v436 = vunpack.c.l.b16 %v134
    %v437 = vunpack.c.h.b16 %v134
    %v438 = vunpack.c.l.b16 %v135
    %v439 = vunpack.c.h.b16 %v135
    %v440 = vunpack.c.l.b16 %v136
    %v441 = vunpack.c.h.b16 %v136
    %v442 = vunpack.c.l.b16 %v137
    %v443 = vunpack.c.h.b16 %v137
    %v444 = vunpack.c.l.b16 %v138
    %v445 = vunpack.c.h.b16 %v138
    %v446 = vunpack.c.l.b16 %v139
    %v447 = vunpack.c.h.b16 %v139
    %v448 = vunpack.c.l.b16 %v140
    %v449 = vunpack.c.h.b16 %v140
    %v450 = vunpack.c.l.b16 %v141
    %v451 = vunpack.c.h.b16 %v141
    %v452 = vunpack.c.l.b16 %v142
    %v453 = vunpack.c.h.b16 %v142
    %v454 = vunpack.c.l.b16 %v143
    %v455 = vunpack.c.h.b16 %v143
    %v456 = vunpack.c.l.b16 %v144
    %v457 = vunpack.c.h.b16 %v144
    %v458 = vunpack.c.l.b16 %v145
    %v459 = vunpack.c.h.b16 %v145
    %v460 = vunpack.c.l.b16 %v146
    %v461 = vunpack.c.h.b16 %v146
    %v462 = vunpack.c.l.b16 %v147
    %v463 = vunpack.c.h.b16 %v147
    %v464 = vunpack.c.l.b16 %v148
    %v465 = vunpack.c.h.b16 %v148
    %v466 = vunpack.c.l.b16 %v149
    %v467 = vunpack.c.h.b16 %v149
    %v468 = vunpack.c.l.b16 %v150
    %v469 = vunpack.c.h.b16 %v150
    %v470 = vunpack.c.l.b16 %v151
    %v471 = vunpack.c.h.b16 %v151
    %v472 = vunpack.c.l.b16 %v152
    %v473 = vunpack.c.h.b16 %v152
    %v474 = vunpack.c.l.b16 %v153
    %v475 = vunpack.c.h.b16 %v153
    %v476 = vunpack.c.l.b16 %v154
    %v477 = vunpack.c.h.b16 %v154
    %v478 = vunpack.c.l.b16 %v155
    %v479 = vunpack.c.h.b16 %v155
    %v480 = vunpack.c.l.b16 %v156
    %v481 = vunpack.c.h.b16 %v156
    %v482 = vunpack.c.l.b16 %v157
    %v483 = vunpack.c.h.b16 %v157
    %v484 = vunpack.c.l.b16 %v158
    %v485 = vunpack.c.h.b16 %v158
    %v486 = vunpack.c.l.b16 %v159
    %v487 = vunpack.c.h.b16 %v159
    %v488 = vunpack.c.l.b16 %v160
    %v489 = vunpack.c.h.b16 %v160
    %v490 = vunpack.c.l.b16 %v161
    %v491 = vunpack.c.h.b16 %v161
    %v492 = vunpack.c.l.b16 %v162
    %v493 = vunpack.c.h.b16 %v162
    %v494 = vunpack.c.l.b16 %v163
    %v495 = vunpack.c.h.b16 %v163
    %v496 = vunpack.c.l.b16 %v164
    %v497 = vunpack.c.h.b16 %v164
    %v498 = vunpack.c.l.b16 %v165
    %v499 = vunpack.c.h.b16 %v165
    %v500 = vunpack.c.l.b16 %v166
    %v501 = vunpack.c.h.b16 %v166
    %v502 = vunpack.c.l.b16 %v167
    %v503 = vunpack.c.h.b16 %v167
    %v504 = vunpack.c.l.b16 %v168
    %v505 = vunpack.c.h.b16 %v168
    %v506 = vunpack.c.l.b16 %v169
    %v507 = vunpack.c.h.b16 %v169
    %v508 = vunpack.c.l.b16 %v170
    %v509 = vunpack.c.h.b16 %v170
    %v510 = vunpack.c.l.b16 %v171
    %v511 = vunpack.c.h.b16 %v171
    %v512 = vunpack.c.l.b16 %v172
    %v513 = vunpack.c.h.b16 %v172
    %v514 = vunpack.c.l.b16 %v173
    %v515 = vunpack.c.h.b16 %v173
    %v516 = vunpack.c.l.b16 %v174
    %v517 = vunpack.c.h.b16 %v174
    %v518 = vunpack.c.l.b16 %v175
    %v519 = vunpack.c.h.b16 %v175
    %v520 = vunpack.c.l.b16 %v176
    %v521 = vunpack.c.h.b16 %v176
    %v522 = vunpack.c.l.b16 %v177
    %v523 = vunpack.c.h.b16 %v177
    %v524 = vunpack.c.l.b16 %v178
    %v525 = vunpack.c.h.b16 %v178
    %v526 = vunpack.c.l.b16 %v179
    %v527 = vunpack.c.h.b16 %v179
    %v528 = vunpack.c.l.b16 %v180
    %v529 = vunpack.c.h.b16 %v180
    %v530 = vunpack.c.l.b16 %v181
    %v531 = vunpack.c.h.b16 %v181
    %v532 = vunpack.c.l.b16 %v182
    %v533 = vunpack.c.h.b16 %v182
    %v534 = vunpack.c.l.b16 %v183
    %v535 = vunpack.c.h.b16 %v183
    %v536 = vunpack.c.l.b16 %v184
    %v537 = vunpack.c.h.b16 %v184
    %v538 = vunpack.c.l.b16 %v185
    %v539 = vunpack.c.h.b16 %v185
    %v540 = vunpack.c.l.b16 %v186
    %v541 = vunpack.c.h.b16 %v186
    %v542 = vunpack.c.l.b16 %v187
    %v543 = vunpack.c.h.b16 %v187
    %v544 = vunpack.c.l.b16 %v188
    %v545 = vunpack.c.h.b16 %v188
    %v546 = vunpack.c.l.b16 %v189
    %v547 = vunpack.c.h.b16 %v189
    %v548 = vunpack.c.l.b16 %v190
    %v549 = vunpack.c.h.b16 %v190
    %v550 = vunpack.c.l.b16 %v191
    %v551 = vunpack.c.h.b16 %v191
    %v552 = vunpack.c.l.b16 %v192
    %v553 = vunpack.c.h.b16 %v192
    %v554 = vunpack.c.l.b16 %v193
    %v555 = vunpack.c.h.b16 %v193
    %v556 = vunpack.c.l.b16 %v194
    %v557 = vunpack.c.h.b16 %v194
    %v558 = vunpack.c.l.b16 %v195
    %v559 = vunpack.c.h.b16 %v195
    %v560 = vunpack.c.l.b16 %v196
    %v561 = vunpack.c.h.b16 %v196
    %v562 = vunpack.c.l.b16 %v197
    %v563 = vunpack.c.h.b16 %v197
    %v564 = vunpack.c.l.b16 %v198
    %v565 = vunpack.c.h.b16 %v198
    %v566 = vunpack.c.l.b16 %v199
    %v567 = vunpack.c.h.b16 %v199
    %v568 = vunpack.c.l.b16 %v200
    %v569 = vunpack.c.h.b16 %v200
    %v570 = vunpack.c.l.b16 %v201
    %v571 = vunpack.c.h.b16 %v201
    %v572 = vunpack.c.l.b16 %v202
    %v573 = vunpack.c.h.b16 %v202
    %v574 = vunpack.c.l.b16 %v203
    %v575 = vunpack.c.h.b16 %v203
    %v576 = vunpack.c.l.b16 %v204
    %v577 = vunpack.c.h.b16 %v204
    %v578 = vunpack.c.l.b16 %v205
    %v579 = vunpack.c.h.b16 %v205
    %v580 = vunpack.c.l.b16 %v206
    %v581 = vunpack.c.h.b16 %v206
    %v582 = vunpack.c.l.b16 %v207
    %v583 = vunpack.c.h.b16 %v207
    %v584 = vunpack.c.l.b16 %v208
    %v585 = vunpack.c.h.b16 %v208
    %v586 = vunpack.c.l.b16 %v209
    %v587 = vunpack.c.h.b16 %v209
    %v588 = vunpack.c.l.b16 %v210
    %v589 = vunpack.c.h.b16 %v210
    %v590 = vunpack.c.l.b16 %v211
    %v591 = vunpack.c.h.b16 %v211
    %v592 = vunpack.c.l.b16 %v212
    %v593 = vunpack.c.h.b16 %v212
    %v594 = vunpack.c.l.b16 %v213
    %v595 = vunpack.c.h.b16 %v213
    %v596 = vunpack.c.l.b16 %v214
    %v597 = vunpack.c.h.b16 %v214
    %v598 = vunpack.c.l.b16 %v215
    %v599 = vunpack.c.h.b16 %v215
    %v600 = vunpack.c.l.b16 %v216
    %v601 = vunpack.c.h.b16 %v216
    %v602 = vunpack.c.l.b16 %v217
    %v603 = vunpack.c.h.b16 %v217
    %v604 = vpack.c.b16 %v350, %v348
    %v605 = vpack.c.b16 %v351, %v349
    %v606 = vpack.c.b16 %v354, %v352
    %v607 = vpack.c.b16 %v355, %v353
    %v608 = vpack.c.b16 %v358, %v356
    %v609 = vpack.c.b16 %v359, %v357
    %v610 = vpack.c.b16 %v362, %v360
    %v611 = vpack.c.b16 %v363, %v361
    %v612 = vpack.c.b16 %v366, %v364
    %v613 = vpack.c.b16 %v367, %v365
    %v614 = vpack.c.b16 %v370, %v368
    %v615 = vpack.c.b16 %v371, %v369
    %v616 = vpack.c.b16 %v374, %v372
    %v617 = vpack.c.b16 %v375, %v373
    %v618 = vpack.c.b16 %v378, %v376
    %v619 = vpack.c.b16 %v379, %v377
    %v620 = vpack.c.b16 %v382, %v380
    %v621 = vpack.c.b16 %v383, %v381
    %v622 = vpack.c.b16 %v386, %v384
    %v623 = vpack.c.b16 %v387, %v385
    %v624 = vpack.c.b16 %v390, %v388
    %v625 = vpack.c.b16 %v391, %v389
    %v626 = vpack.c.b16 %v394, %v392
    %v627 = vpack.c.b16 %v395, %v393
    %v628 = vpack.c.b16 %v398, %v396
    %v629 = vpack.c.b16 %v399, %v397
    %v630 = vpack.c.b16 %v402, %v400
    %v631 = vpack.c.b16 %v403, %v401
    %v632 = vpack.c.b16 %v406, %v404
    %v633 = vpack.c.b16 %v407, %v405
    %v634 = vpack.c.b16 %v410, %v408
    %v635 = vpack.c.b16 %v411, %v409
    %v636 = vpack.c.b16 %v414, %v412
    %v637 = vpack.c.b16 %v415, %v413
    %v638 = vpack.c.b16 %v418, %v416
    %v639 = vpack.c.b16 %v419, %v417
    %v640 = vpack.c.b16 %v422, %v420
    %v641 = vpack.c.b16 %v423, %v421
    %v642 = vpack.c.b16 %v426, %v424
    %v643 = vpack.c.b16 %v427, %v425
    %v644 = vpack.c.b16 %v430, %v428
    %v645 = vpack.c.b16 %v431, %v429
    %v646 = vpack.c.b16 %v434, %v432
    %v647 = vpack.c.b16 %v435, %v433
    %v648 = vpack.c.b16 %v438, %v436
    %v649 = vpack.c.b16 %v439, %v437
    %v650 = vpack.c.b16 %v442, %v440
    %v651 = vpack.c.b16 %v443, %v441
    %v652 = vpack.c.b16 %v446, %v444
    %v653 = vpack.c.b16 %v447, %v445
    %v654 = vpack.c.b16 %v450, %v448
    %v655 = vpack.c.b16 %v451, %v449
    %v656 = vpack.c.b16 %v454, %v452
    %v657 = vpack.c.b16 %v455, %v453
    %v658 = vpack.c.b16 %v458, %v456
    %v659 = vpack.c.b16 %v459, %v457
    %v660 = vpack.c.b16 %v462, %v460
    %v661 = vpack.c.b16 %v463, %v461
    %v662 = vpack.c.b16 %v466, %v464
    %v663 = vpack.c.b16 %v467, %v465
    %v664 = vpack.c.b16 %v470, %v468
    %v665 = vpack.c.b16 %v471, %v469
    %v666 = vpack.c.b16 %v474, %v472
    %v667 = vpack.c.b16 %v475, %v473
    %v668 = vpack.c.b16 %v478, %v476
    %v669 = vpack.c.b16 %v479, %v477
    %v670 = vpack.c.b16 %v482, %v480
    %v671 = vpack.c.b16 %v483, %v481
    %v672 = vpack.c.b16 %v486, %v484
    %v673 = vpack.c.b16 %v487, %v485
    %v674 = vpack.c.b16 %v490, %v488
    %v675 = vpack.c.b16 %v491, %v489
    %v676 = vpack.c.b16 %v494, %v492
    %v677 = vpack.c.b16 %v495, %v493
    %v678 = vpack.c.b16 %v498, %v496
    %v679 = vpack.c.b16 %v499, %v497
    %v680 = vpack.c.b16 %v502, %v500
    %v681 = vpack.c.b16 %v503, %v501
    %v682 = vpack.c.b16 %v506, %v504
    %v683 = vpack.c.b16 %v507, %v505
    %v684 = vpack.c.b16 %v510, %v508
    %v685 = vpack.c.b16 %v511, %v509
    %v686 = vpack.c.b16 %v514, %v512
    %v687 = vpack.c.b16 %v515, %v513
    %v688 = vpack.c.b16 %v518, %v516
    %v689 = vpack.c.b16 %v519, %v517
    %v690 = vpack.c.b16 %v522, %v520
    %v691 = vpack.c.b16 %v523, %v521
    %v692 = vpack.c.b16 %v526, %v524
    %v693 = vpack.c.b16 %v527, %v525
    %v694 = vpack.c.b16 %v530, %v528
    %v695 = vpack.c.b16 %v531, %v529
    %v696 = vpack.c.b16 %v534, %v532
    %v697 = vpack.c.b16 %v535, %v533
    %v698 = vpack.c.b16 %v538, %v536
    %v699 = vpack.c.b16 %v539, %v537
    %v700 = vpack.c.b16 %v542, %v540
    %v701 = vpack.c.b16 %v543, %v541
    %v702 = vpack.c.b16 %v546, %v544
    %v703 = vpack.c.b16 %v547, %v545
    %v704 = vpack.c.b16 %v550, %v548
    %v705 = vpack.c.b16 %v551, %v549
    %v706 = vpack.c.b16 %v554, %v552
    %v707 = vpack.c.b16 %v555, %v553
    %v708 = vpack.c.b16 %v558, %v556
    %v709 = vpack.c.b16 %v559, %v557
    %v710 = vpack.c.b16 %v562, %v560
    %v711 = vpack.c.b16 %v563, %v561
    %v712 = vpack.c.b16 %v566, %v564
    %v713 = vpack.c.b16 %v567, %v565
    %v714 = vpack.c.b16 %v570, %v568
    %v715 = vpack.c.b16 %v571, %v569
    %v716 = vpack.c.b16 %v574, %v572
    %v717 = vpack.c.b16 %v575, %v573
    %v718 = vpack.c.b16 %v578, %v576
    %v719 = vpack.c.b16 %v579, %v577
    %v720 = vpack.c.b16 %v582, %v580
    %v721 = vpack.c.b16 %v583, %v581
    %v722 = vpack.c.b16 %v586, %v584
    %v723 = vpack.c.b16 %v587, %v585
    %v724 = vpack.c.b16 %v590, %v588
    %v725 = vpack.c.b16 %v591, %v589
    %v726 = vpack.c.b16 %v594, %v592
    %v727 = vpack.c.b16 %v595, %v593
    %v728 = vpack.c.b16 %v598, %v596
    %v729 = vpack.c.b16 %v599, %v597
    %v730 = vpack.c.b16 %v602, %v600
    %v731 = vpack.c.b16 %v603, %v601
    %860 = vmatprep.subr.bf16.mxu0 %v605
    %861 = vmatpush1.bf16.msra.mxu0 %v604
    %862 = vmatprep.subr.bf16.mxu0 %v607
    %863 = vmatpush1.bf16.msra.mxu0 %v606
    %864 = vmatprep.subr.bf16.mxu0 %v609
    %865 = vmatpush1.bf16.msra.mxu0 %v608
    %866 = vmatprep.subr.bf16.mxu0 %v611
    %867 = vmatpush1.bf16.msra.mxu0 %v610
    %868 = vmatprep.subr.bf16.mxu0 %v613
    %869 = vmatpush1.bf16.msra.mxu0 %v612
    %870 = vmatprep.subr.bf16.mxu0 %v615
    %871 = vmatpush1.bf16.msra.mxu0 %v614
    %872 = vmatprep.subr.bf16.mxu0 %v617
    %873 = vmatpush1.bf16.msra.mxu0 %v616
    %874 = vmatprep.subr.bf16.mxu0 %v619
    %875 = vmatpush1.bf16.msra.mxu0 %v618
    %876 = vmatprep.subr.bf16.mxu0 %v621
    %877 = vmatpush1.bf16.msra.mxu0 %v620
    %878 = vmatprep.subr.bf16.mxu0 %v623
    %879 = vmatpush1.bf16.msra.mxu0 %v622
    %880 = vmatprep.subr.bf16.mxu0 %v625
    %881 = vmatpush1.bf16.msra.mxu0 %v624
    %882 = vmatprep.subr.bf16.mxu0 %v627
    %883 = vmatpush1.bf16.msra.mxu0 %v626
    %884 = vmatprep.subr.bf16.mxu0 %v629
    %885 = vmatpush1.bf16.msra.mxu0 %v628
    %886 = vmatprep.subr.bf16.mxu0 %v631
    %887 = vmatpush1.bf16.msra.mxu0 %v630
    %888 = vmatprep.subr.bf16.mxu0 %v633
    %889 = vmatpush1.bf16.msra.mxu0 %v632
    %890 = vmatprep.subr.bf16.mxu0 %v635
    %891 = vmatpush1.bf16.msra.mxu0 %v634
    %892 = vmatprep.mubr.bf16.mxu0 %v83
    %893 = vmatmul.mubr.bf16.gmra.mrb[0].mxu0 %v82
    %v894 = vpop.f32.mrb[0].mxu0
    %v895 = vadd.f32 %v218, %v894
    %v896 = vpop.f32.mrb[0].mxu0
    %v897 = vadd.f32 %v219, %v896
    %v898 = vpop.f32.mrb[0].mxu0
    %v899 = vpop.f32.mrb[0].mxu0
    %900 = vdwg.mxu0
    %901 = vmatprep.subr.bf16.mxu0 %v637
    %902 = vmatpush1.bf16.msra.mxu0 %v636
    %903 = vmatprep.subr.bf16.mxu0 %v639
    %904 = vmatpush1.bf16.msra.mxu0 %v638
    %905 = vmatprep.subr.bf16.mxu0 %v641
    %906 = vmatpush1.bf16.msra.mxu0 %v640
    %907 = vmatprep.subr.bf16.mxu0 %v643
    %908 = vmatpush1.bf16.msra.mxu0 %v642
    %909 = vmatprep.subr.bf16.mxu0 %v645
    %910 = vmatpush1.bf16.msra.mxu0 %v644
    %911 = vmatprep.subr.bf16.mxu0 %v647
    %912 = vmatpush1.bf16.msra.mxu0 %v646
    %913 = vmatprep.subr.bf16.mxu0 %v649
    %914 = vmatpush1.bf16.msra.mxu0 %v648
    %915 = vmatprep.subr.bf16.mxu0 %v651
    %916 = vmatpush1.bf16.msra.mxu0 %v650
    %917 = vmatprep.subr.bf16.mxu0 %v653
    %918 = vmatpush1.bf16.msra.mxu0 %v652
    %919 = vmatprep.subr.bf16.mxu0 %v655
    %920 = vmatpush1.bf16.msra.mxu0 %v654
    %921 = vmatprep.subr.bf16.mxu0 %v657
    %922 = vmatpush1.bf16.msra.mxu0 %v656
    %923 = vmatprep.subr.bf16.mxu0 %v659
    %924 = vmatpush1.bf16.msra.mxu0 %v658
    %925 = vmatprep.subr.bf16.mxu0 %v661
    %926 = vmatpush1.bf16.msra.mxu0 %v660
    %927 = vmatprep.subr.bf16.mxu0 %v663
    %928 = vmatpush1.bf16.msra.mxu0 %v662
    %929 = vmatprep.subr.bf16.mxu0 %v665
    %930 = vmatpush1.bf16.msra.mxu0 %v664
    %931 = vmatprep.subr.bf16.mxu0 %v667
    %932 = vmatpush1.bf16.msra.mxu0 %v666
    %933 = vmatprep.mubr.bf16.mxu0 %v85
    %934 = vmatmul.mubr.bf16.gmra.mrb[0].mxu0 %v84
    %v935 = vpop.f32.mrb[0].mxu0
    %v936 = vadd.f32 %v895, %v935
    %v937 = vpop.f32.mrb[0].mxu0
    %v938 = vadd.f32 %v897, %v937
    %v939 = vpop.f32.mrb[0].mxu0
    %v940 = vpop.f32.mrb[0].mxu0
    %941 = vdwg.mxu0
    %942 = vmatprep.subr.bf16.mxu0 %v669
    %943 = vmatpush1.bf16.msra.mxu0 %v668
    %944 = vmatprep.subr.bf16.mxu0 %v671
    %945 = vmatpush1.bf16.msra.mxu0 %v670
    %946 = vmatprep.subr.bf16.mxu0 %v673
    %947 = vmatpush1.bf16.msra.mxu0 %v672
    %948 = vmatprep.subr.bf16.mxu0 %v675
    %949 = vmatpush1.bf16.msra.mxu0 %v674
    %950 = vmatprep.subr.bf16.mxu0 %v677
    %951 = vmatpush1.bf16.msra.mxu0 %v676
    %952 = vmatprep.subr.bf16.mxu0 %v679
    %953 = vmatpush1.bf16.msra.mxu0 %v678
    %954 = vmatprep.subr.bf16.mxu0 %v681
    %955 = vmatpush1.bf16.msra.mxu0 %v680
    %956 = vmatprep.subr.bf16.mxu0 %v683
    %957 = vmatpush1.bf16.msra.mxu0 %v682
    %958 = vmatprep.subr.bf16.mxu0 %v685
    %959 = vmatpush1.bf16.msra.mxu0 %v684
    %960 = vmatprep.subr.bf16.mxu0 %v687
    %961 = vmatpush1.bf16.msra.mxu0 %v686
    %962 = vmatprep.subr.bf16.mxu0 %v689
    %963 = vmatpush1.bf16.msra.mxu0 %v688
    %964 = vmatprep.subr.bf16.mxu0 %v691
    %965 = vmatpush1.bf16.msra.mxu0 %v690
    %966 = vmatprep.subr.bf16.mxu0 %v693
    %967 = vmatpush1.bf16.msra.mxu0 %v692
    %968 = vmatprep.subr.bf16.mxu0 %v695
    %969 = vmatpush1.bf16.msra.mxu0 %v694
    %970 = vmatprep.subr.bf16.mxu0 %v697
    %971 = vmatpush1.bf16.msra.mxu0 %v696
    %972 = vmatprep.subr.bf16.mxu0 %v699
    %973 = vmatpush1.bf16.msra.mxu0 %v698
    %974 = vmatprep.mubr.bf16.mxu0 %v87
    %975 = vmatmul.mubr.bf16.gmra.mrb[0].mxu0 %v86
    %v976 = vpop.f32.mrb[0].mxu0
    %v977 = vadd.f32 %v936, %v976
    %v978 = vpop.f32.mrb[0].mxu0
    %v979 = vadd.f32 %v938, %v978
    %v980 = vpop.f32.mrb[0].mxu0
    %v981 = vpop.f32.mrb[0].mxu0
    %982 = vdwg.mxu0
    %983 = vmatprep.subr.bf16.mxu0 %v701
    %984 = vmatpush1.bf16.msra.mxu0 %v700
    %985 = vmatprep.subr.bf16.mxu0 %v703
    %986 = vmatpush1.bf16.msra.mxu0 %v702
    %987 = vmatprep.subr.bf16.mxu0 %v705
    %988 = vmatpush1.bf16.msra.mxu0 %v704
    %989 = vmatprep.subr.bf16.mxu0 %v707
    %990 = vmatpush1.bf16.msra.mxu0 %v706
    %991 = vmatprep.subr.bf16.mxu0 %v709
    %992 = vmatpush1.bf16.msra.mxu0 %v708
    %993 = vmatprep.subr.bf16.mxu0 %v711
    %994 = vmatpush1.bf16.msra.mxu0 %v710
    %995 = vmatprep.subr.bf16.mxu0 %v713
    %996 = vmatpush1.bf16.msra.mxu0 %v712
    %997 = vmatprep.subr.bf16.mxu0 %v715
    %998 = vmatpush1.bf16.msra.mxu0 %v714
    %999 = vmatprep.subr.bf16.mxu0 %v717
    %1000 = vmatpush1.bf16.msra.mxu0 %v716
    %1001 = vmatprep.subr.bf16.mxu0 %v719
    %1002 = vmatpush1.bf16.msra.mxu0 %v718
    %1003 = vmatprep.subr.bf16.mxu0 %v721
    %1004 = vmatpush1.bf16.msra.mxu0 %v720
    %1005 = vmatprep.subr.bf16.mxu0 %v723
    %1006 = vmatpush1.bf16.msra.mxu0 %v722
    %1007 = vmatprep.subr.bf16.mxu0 %v725
    %1008 = vmatpush1.bf16.msra.mxu0 %v724
    %1009 = vmatprep.subr.bf16.mxu0 %v727
    %1010 = vmatpush1.bf16.msra.mxu0 %v726
    %1011 = vmatprep.subr.bf16.mxu0 %v729
    %1012 = vmatpush1.bf16.msra.mxu0 %v728
    %1013 = vmatprep.subr.bf16.mxu0 %v731
    %1014 = vmatpush1.bf16.msra.mxu0 %v730
    %1015 = vmatprep.mubr.bf16.mxu0 %v89
    %1016 = vmatmul.mubr.bf16.gmra.mrb[0].mxu0 %v88
    %v1017 = vpop.f32.mrb[0].mxu0
    %v1018 = vadd.f32 %v977, %v1017
    %v1019 = vpop.f32.mrb[0].mxu0
    %v1020 = vadd.f32 %v979, %v1019
    %v1021 = vpop.f32.mrb[0].mxu0
    %v1022 = vpop.f32.mrb[0].mxu0
    %1023 = vdwg.mxu0
    %v1024 = vmax.f32 %v1018, 0.0
    %v1025 = vmax.f32 %v1020, 0.0
    %v1026 = vpack.c.bf16 %v1024, %v1024
    %v1027 = vpack.c.bf16 %v1025, %v1025
    %v1028 = vld [vmem:[%s6] sm:$0xff]
    %v1029 = vld [vmem:[%s6 + $0x8] sm:$0xff]
    %v1030 = vld [vmem:[%s6 + $0x10] sm:$0xff]
    %v1031 = vld [vmem:[%s6 + $0x18] sm:$0xff]
    %v1032 = vld [vmem:[%s6 + $0x20] sm:$0xff]
    %v1033 = vld [vmem:[%s6 + $0x28] sm:$0xff]
    %v1034 = vld [vmem:[%s6 + $0x30] sm:$0xff]
    %v1035 = vld [vmem:[%s6 + $0x38] sm:$0xff]
    %v1036 = vld [vmem:[%s6 + $0x40] sm:$0xff]
    %v1037 = vld [vmem:[%s6 + $0x48] sm:$0xff]
    %v1038 = vld [vmem:[%s6 + $0x50] sm:$0xff]
    %v1039 = vld [vmem:[%s6 + $0x58] sm:$0xff]
    %v1040 = vld [vmem:[%s6 + $0x60] sm:$0xff]
    %v1041 = vld [vmem:[%s6 + $0x68] sm:$0xff]
    %v1042 = vld [vmem:[%s6 + $0x70] sm:$0xff]
    %v1043 = vld [vmem:[%s6 + $0x78] sm:$0xff]
    %v1044 = vld [vmem:[%s6 + $0x80] sm:$0xff]
    %v1045 = vld [vmem:[%s6 + $0x88] sm:$0xff]
    %v1046 = vld [vmem:[%s6 + $0x90] sm:$0xff]
    %v1047 = vld [vmem:[%s6 + $0x98] sm:$0xff]
    %v1048 = vld [vmem:[%s6 + $0xa0] sm:$0xff]
    %v1049 = vld [vmem:[%s6 + $0xa8] sm:$0xff]
    %v1050 = vld [vmem:[%s6 + $0xb0] sm:$0xff]
    %v1051 = vld [vmem:[%s6 + $0xb8] sm:$0xff]
    %v1052 = vld [vmem:[%s6 + $0xc0] sm:$0xff]
    %v1053 = vld [vmem:[%s6 + $0xc8] sm:$0xff]
    %v1054 = vld [vmem:[%s6 + $0xd0] sm:$0xff]
    %v1055 = vld [vmem:[%s6 + $0xd8] sm:$0xff]
    %v1056 = vld [vmem:[%s6 + $0xe0] sm:$0xff]
    %v1057 = vld [vmem:[%s6 + $0xe8] sm:$0xff]
    %v1058 = vld [vmem:[%s6 + $0xf0] sm:$0xff]
    %v1059 = vld [vmem:[%s6 + $0xf8] sm:$0xff]
    %v1060 = vld [vmem:[%s6 + $0x100] sm:$0xff]
    %v1061 = vld [vmem:[%s6 + $0x108] sm:$0xff]
    %v1062 = vld [vmem:[%s6 + $0x110] sm:$0xff]
    %v1063 = vld [vmem:[%s6 + $0x118] sm:$0xff]
    %v1064 = vld [vmem:[%s6 + $0x120] sm:$0xff]
    %v1065 = vld [vmem:[%s6 + $0x128] sm:$0xff]
    %v1066 = vld [vmem:[%s6 + $0x130] sm:$0xff]
    %v1067 = vld [vmem:[%s6 + $0x138] sm:$0xff]
    %v1068 = vld [vmem:[%s6 + $0x140] sm:$0xff]
    %v1069 = vld [vmem:[%s6 + $0x148] sm:$0xff]
    %v1070 = vld [vmem:[%s6 + $0x150] sm:$0xff]
    %v1071 = vld [vmem:[%s6 + $0x158] sm:$0xff]
    %v1072 = vld [vmem:[%s6 + $0x160] sm:$0xff]
    %v1073 = vld [vmem:[%s6 + $0x168] sm:$0xff]
    %v1074 = vld [vmem:[%s6 + $0x170] sm:$0xff]
    %v1075 = vld [vmem:[%s6 + $0x178] sm:$0xff]
    %v1076 = vld [vmem:[%s6 + $0x180] sm:$0xff]
    %v1077 = vld [vmem:[%s6 + $0x188] sm:$0xff]
    %v1078 = vld [vmem:[%s6 + $0x190] sm:$0xff]
    %v1079 = vld [vmem:[%s6 + $0x198] sm:$0xff]
    %v1080 = vld [vmem:[%s6 + $0x1a0] sm:$0xff]
    %v1081 = vld [vmem:[%s6 + $0x1a8] sm:$0xff]
    %v1082 = vld [vmem:[%s6 + $0x1b0] sm:$0xff]
    %v1083 = vld [vmem:[%s6 + $0x1b8] sm:$0xff]
    %v1084 = vld [vmem:[%s6 + $0x1c0] sm:$0xff]
    %v1085 = vld [vmem:[%s6 + $0x1c8] sm:$0xff]
    %v1086 = vld [vmem:[%s6 + $0x1d0] sm:$0xff]
    %v1087 = vld [vmem:[%s6 + $0x1d8] sm:$0xff]
    %v1088 = vld [vmem:[%s6 + $0x1e0] sm:$0xff]
    %v1089 = vld [vmem:[%s6 + $0x1e8] sm:$0xff]
    %v1090 = vld [vmem:[%s6 + $0x1f0] sm:$0xff]
    %v1091 = vld [vmem:[%s6 + $0x1f8] sm:$0xff]
    %v1092 = vld [vmem:[%s6 + $0x200] sm:$0xff]
    %v1093 = vld [vmem:[%s6 + $0x208] sm:$0xff]
    %v1094 = vld [vmem:[%s6 + $0x210] sm:$0xff]
    %v1095 = vld [vmem:[%s6 + $0x218] sm:$0xff]
    %v1096 = vld [vmem:[%s6 + $0x220] sm:$0xff]
    %v1097 = vld [vmem:[%s6 + $0x228] sm:$0xff]
    %v1098 = vld [vmem:[%s6 + $0x230] sm:$0xff]
    %v1099 = vld [vmem:[%s6 + $0x238] sm:$0xff]
    %v1100 = vld [vmem:[%s6 + $0x240] sm:$0xff]
    %v1101 = vld [vmem:[%s6 + $0x248] sm:$0xff]
    %v1102 = vld [vmem:[%s6 + $0x250] sm:$0xff]
    %v1103 = vld [vmem:[%s6 + $0x258] sm:$0xff]
    %v1104 = vld [vmem:[%s6 + $0x260] sm:$0xff]
    %v1105 = vld [vmem:[%s6 + $0x268] sm:$0xff]
    %v1106 = vld [vmem:[%s6 + $0x270] sm:$0xff]
    %v1107 = vld [vmem:[%s6 + $0x278] sm:$0xff]
    %v1108 = vld [vmem:[%s6 + $0x280] sm:$0xff]
    %v1109 = vld [vmem:[%s6 + $0x288] sm:$0xff]
    %v1110 = vld [vmem:[%s6 + $0x290] sm:$0xff]
    %v1111 = vld [vmem:[%s6 + $0x298] sm:$0xff]
    %v1112 = vld [vmem:[%s6 + $0x2a0] sm:$0xff]
    %v1113 = vld [vmem:[%s6 + $0x2a8] sm:$0xff]
    %v1114 = vld [vmem:[%s6 + $0x2b0] sm:$0xff]
    %v1115 = vld [vmem:[%s6 + $0x2b8] sm:$0xff]
    %v1116 = vld [vmem:[%s6 + $0x2c0] sm:$0xff]
    %v1117 = vld [vmem:[%s6 + $0x2c8] sm:$0xff]
    %v1118 = vld [vmem:[%s6 + $0x2d0] sm:$0xff]
    %v1119 = vld [vmem:[%s6 + $0x2d8] sm:$0xff]
    %v1120 = vld [vmem:[%s6 + $0x2e0] sm:$0xff]
    %v1121 = vld [vmem:[%s6 + $0x2e8] sm:$0xff]
    %v1122 = vld [vmem:[%s6 + $0x2f0] sm:$0xff]
    %v1123 = vld [vmem:[%s6 + $0x2f8] sm:$0xff]
    %v1124 = vld [vmem:[%s6 + $0x300] sm:$0xff]
    %v1125 = vld [vmem:[%s6 + $0x308] sm:$0xff]
    %v1126 = vld [vmem:[%s6 + $0x310] sm:$0xff]
    %v1127 = vld [vmem:[%s6 + $0x318] sm:$0xff]
    %v1128 = vld [vmem:[%s6 + $0x320] sm:$0xff]
    %v1129 = vld [vmem:[%s6 + $0x328] sm:$0xff]
    %v1130 = vld [vmem:[%s6 + $0x330] sm:$0xff]
    %v1131 = vld [vmem:[%s6 + $0x338] sm:$0xff]
    %v1132 = vld [vmem:[%s6 + $0x340] sm:$0xff]
    %v1133 = vld [vmem:[%s6 + $0x348] sm:$0xff]
    %v1134 = vld [vmem:[%s6 + $0x350] sm:$0xff]
    %v1135 = vld [vmem:[%s6 + $0x358] sm:$0xff]
    %v1136 = vld [vmem:[%s6 + $0x360] sm:$0xff]
    %v1137 = vld [vmem:[%s6 + $0x368] sm:$0xff]
    %v1138 = vld [vmem:[%s6 + $0x370] sm:$0xff]
    %v1139 = vld [vmem:[%s6 + $0x378] sm:$0xff]
    %v1140 = vld [vmem:[%s6 + $0x380] sm:$0xff]
    %v1141 = vld [vmem:[%s6 + $0x388] sm:$0xff]
    %v1142 = vld [vmem:[%s6 + $0x390] sm:$0xff]
    %v1143 = vld [vmem:[%s6 + $0x398] sm:$0xff]
    %v1144 = vld [vmem:[%s6 + $0x3a0] sm:$0xff]
    %v1145 = vld [vmem:[%s6 + $0x3a8] sm:$0xff]
    %v1146 = vld [vmem:[%s6 + $0x3b0] sm:$0xff]
    %v1147 = vld [vmem:[%s6 + $0x3b8] sm:$0xff]
    %v1148 = vld [vmem:[%s6 + $0x3c0] sm:$0xff]
    %v1149 = vld [vmem:[%s6 + $0x3c8] sm:$0xff]
    %v1150 = vld [vmem:[%s6 + $0x3d0] sm:$0xff]
    %v1151 = vld [vmem:[%s6 + $0x3d8] sm:$0xff]
    %v1152 = vld [vmem:[%s6 + $0x3e0] sm:$0xff]
    %v1153 = vld [vmem:[%s6 + $0x3e8] sm:$0xff]
    %v1154 = vld [vmem:[%s6 + $0x3f0] sm:$0xff]
    %v1155 = vld [vmem:[%s6 + $0x3f8] sm:$0xff]
    %v1156 = vld [vmem:[%s7] sm:$0xff]
    %v1158 = vlaneseq
    %v1159 = vshrl.u32 %v1158, 7
    %v1160 = vsub.s32 0, %v1159
    %v1161 = vrot.slane %v1156, %v1160
    %v1162 = vlaneseq
    %v1163 = vshrl.u32 %v1162, 7
    %v1164 = vsub.s32 1, %v1163
    %v1165 = vrot.slane %v1156, %v1164
    %v1166 = vlaneseq
    %v1167 = vshrl.u32 %v1166, 7
    %v1168 = vsub.s32 2, %v1167
    %v1169 = vrot.slane %v1156, %v1168
    %v1170 = vlaneseq
    %v1171 = vshrl.u32 %v1170, 7
    %v1172 = vsub.s32 3, %v1171
    %v1173 = vrot.slane %v1156, %v1172
    %v1174 = vlaneseq
    %v1175 = vshrl.u32 %v1174, 7
    %v1176 = vsub.s32 4, %v1175
    %v1177 = vrot.slane %v1156, %v1176
    %v1178 = vlaneseq
    %v1179 = vshrl.u32 %v1178, 7
    %v1180 = vsub.s32 5, %v1179
    %v1181 = vrot.slane %v1156, %v1180
    %v1182 = vlaneseq
    %v1183 = vshrl.u32 %v1182, 7
    %v1184 = vsub.s32 6, %v1183
    %v1185 = vrot.slane %v1156, %v1184
    %v1186 = vlaneseq
    %v1187 = vshrl.u32 %v1186, 7
    %v1188 = vsub.s32 7, %v1187
    %v1189 = vrot.slane %v1156, %v1188
    %v1326 = vunpack.c.l.b16 %v1028
    %v1327 = vunpack.c.h.b16 %v1028
    %v1328 = vunpack.c.l.b16 %v1029
    %v1329 = vunpack.c.h.b16 %v1029
    %v1330 = vunpack.c.l.b16 %v1030
    %v1331 = vunpack.c.h.b16 %v1030
    %v1332 = vunpack.c.l.b16 %v1031
    %v1333 = vunpack.c.h.b16 %v1031
    %v1334 = vunpack.c.l.b16 %v1032
    %v1335 = vunpack.c.h.b16 %v1032
    %v1336 = vunpack.c.l.b16 %v1033
    %v1337 = vunpack.c.h.b16 %v1033
    %v1338 = vunpack.c.l.b16 %v1034
    %v1339 = vunpack.c.h.b16 %v1034
    %v1340 = vunpack.c.l.b16 %v1035
    %v1341 = vunpack.c.h.b16 %v1035
    %v1342 = vunpack.c.l.b16 %v1036
    %v1343 = vunpack.c.h.b16 %v1036
    %v1344 = vunpack.c.l.b16 %v1037
    %v1345 = vunpack.c.h.b16 %v1037
    %v1346 = vunpack.c.l.b16 %v1038
    %v1347 = vunpack.c.h.b16 %v1038
    %v1348 = vunpack.c.l.b16 %v1039
    %v1349 = vunpack.c.h.b16 %v1039
    %v1350 = vunpack.c.l.b16 %v1040
    %v1351 = vunpack.c.h.b16 %v1040
    %v1352 = vunpack.c.l.b16 %v1041
    %v1353 = vunpack.c.h.b16 %v1041
    %v1354 = vunpack.c.l.b16 %v1042
    %v1355 = vunpack.c.h.b16 %v1042
    %v1356 = vunpack.c.l.b16 %v1043
    %v1357 = vunpack.c.h.b16 %v1043
    %v1358 = vunpack.c.l.b16 %v1044
    %v1359 = vunpack.c.h.b16 %v1044
    %v1360 = vunpack.c.l.b16 %v1045
    %v1361 = vunpack.c.h.b16 %v1045
    %v1362 = vunpack.c.l.b16 %v1046
    %v1363 = vunpack.c.h.b16 %v1046
    %v1364 = vunpack.c.l.b16 %v1047
    %v1365 = vunpack.c.h.b16 %v1047
    %v1366 = vunpack.c.l.b16 %v1048
    %v1367 = vunpack.c.h.b16 %v1048
    %v1368 = vunpack.c.l.b16 %v1049
    %v1369 = vunpack.c.h.b16 %v1049
    %v1370 = vunpack.c.l.b16 %v1050
    %v1371 = vunpack.c.h.b16 %v1050
    %v1372 = vunpack.c.l.b16 %v1051
    %v1373 = vunpack.c.h.b16 %v1051
    %v1374 = vunpack.c.l.b16 %v1052
    %v1375 = vunpack.c.h.b16 %v1052
    %v1376 = vunpack.c.l.b16 %v1053
    %v1377 = vunpack.c.h.b16 %v1053
    %v1378 = vunpack.c.l.b16 %v1054
    %v1379 = vunpack.c.h.b16 %v1054
    %v1380 = vunpack.c.l.b16 %v1055
    %v1381 = vunpack.c.h.b16 %v1055
    %v1382 = vunpack.c.l.b16 %v1056
    %v1383 = vunpack.c.h.b16 %v1056
    %v1384 = vunpack.c.l.b16 %v1057
    %v1385 = vunpack.c.h.b16 %v1057
    %v1386 = vunpack.c.l.b16 %v1058
    %v1387 = vunpack.c.h.b16 %v1058
    %v1388 = vunpack.c.l.b16 %v1059
    %v1389 = vunpack.c.h.b16 %v1059
    %v1390 = vunpack.c.l.b16 %v1060
    %v1391 = vunpack.c.h.b16 %v1060
    %v1392 = vunpack.c.l.b16 %v1061
    %v1393 = vunpack.c.h.b16 %v1061
    %v1394 = vunpack.c.l.b16 %v1062
    %v1395 = vunpack.c.h.b16 %v1062
    %v1396 = vunpack.c.l.b16 %v1063
    %v1397 = vunpack.c.h.b16 %v1063
    %v1398 = vunpack.c.l.b16 %v1064
    %v1399 = vunpack.c.h.b16 %v1064
    %v1400 = vunpack.c.l.b16 %v1065
    %v1401 = vunpack.c.h.b16 %v1065
    %v1402 = vunpack.c.l.b16 %v1066
    %v1403 = vunpack.c.h.b16 %v1066
    %v1404 = vunpack.c.l.b16 %v1067
    %v1405 = vunpack.c.h.b16 %v1067
    %v1406 = vunpack.c.l.b16 %v1068
    %v1407 = vunpack.c.h.b16 %v1068
    %v1408 = vunpack.c.l.b16 %v1069
    %v1409 = vunpack.c.h.b16 %v1069
    %v1410 = vunpack.c.l.b16 %v1070
    %v1411 = vunpack.c.h.b16 %v1070
    %v1412 = vunpack.c.l.b16 %v1071
    %v1413 = vunpack.c.h.b16 %v1071
    %v1414 = vunpack.c.l.b16 %v1072
    %v1415 = vunpack.c.h.b16 %v1072
    %v1416 = vunpack.c.l.b16 %v1073
    %v1417 = vunpack.c.h.b16 %v1073
    %v1418 = vunpack.c.l.b16 %v1074
    %v1419 = vunpack.c.h.b16 %v1074
    %v1420 = vunpack.c.l.b16 %v1075
    %v1421 = vunpack.c.h.b16 %v1075
    %v1422 = vunpack.c.l.b16 %v1076
    %v1423 = vunpack.c.h.b16 %v1076
    %v1424 = vunpack.c.l.b16 %v1077
    %v1425 = vunpack.c.h.b16 %v1077
    %v1426 = vunpack.c.l.b16 %v1078
    %v1427 = vunpack.c.h.b16 %v1078
    %v1428 = vunpack.c.l.b16 %v1079
    %v1429 = vunpack.c.h.b16 %v1079
    %v1430 = vunpack.c.l.b16 %v1080
    %v1431 = vunpack.c.h.b16 %v1080
    %v1432 = vunpack.c.l.b16 %v1081
    %v1433 = vunpack.c.h.b16 %v1081
    %v1434 = vunpack.c.l.b16 %v1082
    %v1435 = vunpack.c.h.b16 %v1082
    %v1436 = vunpack.c.l.b16 %v1083
    %v1437 = vunpack.c.h.b16 %v1083
    %v1438 = vunpack.c.l.b16 %v1084
    %v1439 = vunpack.c.h.b16 %v1084
    %v1440 = vunpack.c.l.b16 %v1085
    %v1441 = vunpack.c.h.b16 %v1085
    %v1442 = vunpack.c.l.b16 %v1086
    %v1443 = vunpack.c.h.b16 %v1086
    %v1444 = vunpack.c.l.b16 %v1087
    %v1445 = vunpack.c.h.b16 %v1087
    %v1446 = vunpack.c.l.b16 %v1088
    %v1447 = vunpack.c.h.b16 %v1088
    %v1448 = vunpack.c.l.b16 %v1089
    %v1449 = vunpack.c.h.b16 %v1089
    %v1450 = vunpack.c.l.b16 %v1090
    %v1451 = vunpack.c.h.b16 %v1090
    %v1452 = vunpack.c.l.b16 %v1091
    %v1453 = vunpack.c.h.b16 %v1091
    %v1454 = vunpack.c.l.b16 %v1092
    %v1455 = vunpack.c.h.b16 %v1092
    %v1456 = vunpack.c.l.b16 %v1093
    %v1457 = vunpack.c.h.b16 %v1093
    %v1458 = vunpack.c.l.b16 %v1094
    %v1459 = vunpack.c.h.b16 %v1094
    %v1460 = vunpack.c.l.b16 %v1095
    %v1461 = vunpack.c.h.b16 %v1095
    %v1462 = vunpack.c.l.b16 %v1096
    %v1463 = vunpack.c.h.b16 %v1096
    %v1464 = vunpack.c.l.b16 %v1097
    %v1465 = vunpack.c.h.b16 %v1097
    %v1466 = vunpack.c.l.b16 %v1098
    %v1467 = vunpack.c.h.b16 %v1098
    %v1468 = vunpack.c.l.b16 %v1099
    %v1469 = vunpack.c.h.b16 %v1099
    %v1470 = vunpack.c.l.b16 %v1100
    %v1471 = vunpack.c.h.b16 %v1100
    %v1472 = vunpack.c.l.b16 %v1101
    %v1473 = vunpack.c.h.b16 %v1101
    %v1474 = vunpack.c.l.b16 %v1102
    %v1475 = vunpack.c.h.b16 %v1102
    %v1476 = vunpack.c.l.b16 %v1103
    %v1477 = vunpack.c.h.b16 %v1103
    %v1478 = vunpack.c.l.b16 %v1104
    %v1479 = vunpack.c.h.b16 %v1104
    %v1480 = vunpack.c.l.b16 %v1105
    %v1481 = vunpack.c.h.b16 %v1105
    %v1482 = vunpack.c.l.b16 %v1106
    %v1483 = vunpack.c.h.b16 %v1106
    %v1484 = vunpack.c.l.b16 %v1107
    %v1485 = vunpack.c.h.b16 %v1107
    %v1486 = vunpack.c.l.b16 %v1108
    %v1487 = vunpack.c.h.b16 %v1108
    %v1488 = vunpack.c.l.b16 %v1109
    %v1489 = vunpack.c.h.b16 %v1109
    %v1490 = vunpack.c.l.b16 %v1110
    %v1491 = vunpack.c.h.b16 %v1110
    %v1492 = vunpack.c.l.b16 %v1111
    %v1493 = vunpack.c.h.b16 %v1111
    %v1494 = vunpack.c.l.b16 %v1112
    %v1495 = vunpack.c.h.b16 %v1112
    %v1496 = vunpack.c.l.b16 %v1113
    %v1497 = vunpack.c.h.b16 %v1113
    %v1498 = vunpack.c.l.b16 %v1114
    %v1499 = vunpack.c.h.b16 %v1114
    %v1500 = vunpack.c.l.b16 %v1115
    %v1501 = vunpack.c.h.b16 %v1115
    %v1502 = vunpack.c.l.b16 %v1116
    %v1503 = vunpack.c.h.b16 %v1116
    %v1504 = vunpack.c.l.b16 %v1117
    %v1505 = vunpack.c.h.b16 %v1117
    %v1506 = vunpack.c.l.b16 %v1118
    %v1507 = vunpack.c.h.b16 %v1118
    %v1508 = vunpack.c.l.b16 %v1119
    %v1509 = vunpack.c.h.b16 %v1119
    %v1510 = vunpack.c.l.b16 %v1120
    %v1511 = vunpack.c.h.b16 %v1120
    %v1512 = vunpack.c.l.b16 %v1121
    %v1513 = vunpack.c.h.b16 %v1121
    %v1514 = vunpack.c.l.b16 %v1122
    %v1515 = vunpack.c.h.b16 %v1122
    %v1516 = vunpack.c.l.b16 %v1123
    %v1517 = vunpack.c.h.b16 %v1123
    %v1518 = vunpack.c.l.b16 %v1124
    %v1519 = vunpack.c.h.b16 %v1124
    %v1520 = vunpack.c.l.b16 %v1125
    %v1521 = vunpack.c.h.b16 %v1125
    %v1522 = vunpack.c.l.b16 %v1126
    %v1523 = vunpack.c.h.b16 %v1126
    %v1524 = vunpack.c.l.b16 %v1127
    %v1525 = vunpack.c.h.b16 %v1127
    %v1526 = vunpack.c.l.b16 %v1128
    %v1527 = vunpack.c.h.b16 %v1128
    %v1528 = vunpack.c.l.b16 %v1129
    %v1529 = vunpack.c.h.b16 %v1129
    %v1530 = vunpack.c.l.b16 %v1130
    %v1531 = vunpack.c.h.b16 %v1130
    %v1532 = vunpack.c.l.b16 %v1131
    %v1533 = vunpack.c.h.b16 %v1131
    %v1534 = vunpack.c.l.b16 %v1132
    %v1535 = vunpack.c.h.b16 %v1132
    %v1536 = vunpack.c.l.b16 %v1133
    %v1537 = vunpack.c.h.b16 %v1133
    %v1538 = vunpack.c.l.b16 %v1134
    %v1539 = vunpack.c.h.b16 %v1134
    %v1540 = vunpack.c.l.b16 %v1135
    %v1541 = vunpack.c.h.b16 %v1135
    %v1542 = vunpack.c.l.b16 %v1136
    %v1543 = vunpack.c.h.b16 %v1136
    %v1544 = vunpack.c.l.b16 %v1137
    %v1545 = vunpack.c.h.b16 %v1137
    %v1546 = vunpack.c.l.b16 %v1138
    %v1547 = vunpack.c.h.b16 %v1138
    %v1548 = vunpack.c.l.b16 %v1139
    %v1549 = vunpack.c.h.b16 %v1139
    %v1550 = vunpack.c.l.b16 %v1140
    %v1551 = vunpack.c.h.b16 %v1140
    %v1552 = vunpack.c.l.b16 %v1141
    %v1553 = vunpack.c.h.b16 %v1141
    %v1554 = vunpack.c.l.b16 %v1142
    %v1555 = vunpack.c.h.b16 %v1142
    %v1556 = vunpack.c.l.b16 %v1143
    %v1557 = vunpack.c.h.b16 %v1143
    %v1558 = vunpack.c.l.b16 %v1144
    %v1559 = vunpack.c.h.b16 %v1144
    %v1560 = vunpack.c.l.b16 %v1145
    %v1561 = vunpack.c.h.b16 %v1145
    %v1562 = vunpack.c.l.b16 %v1146
    %v1563 = vunpack.c.h.b16 %v1146
    %v1564 = vunpack.c.l.b16 %v1147
    %v1565 = vunpack.c.h.b16 %v1147
    %v1566 = vunpack.c.l.b16 %v1148
    %v1567 = vunpack.c.h.b16 %v1148
    %v1568 = vunpack.c.l.b16 %v1149
    %v1569 = vunpack.c.h.b16 %v1149
    %v1570 = vunpack.c.l.b16 %v1150
    %v1571 = vunpack.c.h.b16 %v1150
    %v1572 = vunpack.c.l.b16 %v1151
    %v1573 = vunpack.c.h.b16 %v1151
    %v1574 = vunpack.c.l.b16 %v1152
    %v1575 = vunpack.c.h.b16 %v1152
    %v1576 = vunpack.c.l.b16 %v1153
    %v1577 = vunpack.c.h.b16 %v1153
    %v1578 = vunpack.c.l.b16 %v1154
    %v1579 = vunpack.c.h.b16 %v1154
    %v1580 = vunpack.c.l.b16 %v1155
    %v1581 = vunpack.c.h.b16 %v1155
    %v1582 = vpack.c.b16 %v1334, %v1326
    %v1583 = vpack.c.b16 %v1335, %v1327
    %v1584 = vpack.c.b16 %v1336, %v1328
    %v1585 = vpack.c.b16 %v1337, %v1329
    %v1586 = vpack.c.b16 %v1338, %v1330
    %v1587 = vpack.c.b16 %v1339, %v1331
    %v1588 = vpack.c.b16 %v1340, %v1332
    %v1589 = vpack.c.b16 %v1341, %v1333
    %v1590 = vpack.c.b16 %v1350, %v1342
    %v1591 = vpack.c.b16 %v1351, %v1343
    %v1592 = vpack.c.b16 %v1352, %v1344
    %v1593 = vpack.c.b16 %v1353, %v1345
    %v1594 = vpack.c.b16 %v1354, %v1346
    %v1595 = vpack.c.b16 %v1355, %v1347
    %v1596 = vpack.c.b16 %v1356, %v1348
    %v1597 = vpack.c.b16 %v1357, %v1349
    %v1598 = vpack.c.b16 %v1366, %v1358
    %v1599 = vpack.c.b16 %v1367, %v1359
    %v1600 = vpack.c.b16 %v1368, %v1360
    %v1601 = vpack.c.b16 %v1369, %v1361
    %v1602 = vpack.c.b16 %v1370, %v1362
    %v1603 = vpack.c.b16 %v1371, %v1363
    %v1604 = vpack.c.b16 %v1372, %v1364
    %v1605 = vpack.c.b16 %v1373, %v1365
    %v1606 = vpack.c.b16 %v1382, %v1374
    %v1607 = vpack.c.b16 %v1383, %v1375
    %v1608 = vpack.c.b16 %v1384, %v1376
    %v1609 = vpack.c.b16 %v1385, %v1377
    %v1610 = vpack.c.b16 %v1386, %v1378
    %v1611 = vpack.c.b16 %v1387, %v1379
    %v1612 = vpack.c.b16 %v1388, %v1380
    %v1613 = vpack.c.b16 %v1389, %v1381
    %v1614 = vpack.c.b16 %v1398, %v1390
    %v1615 = vpack.c.b16 %v1399, %v1391
    %v1616 = vpack.c.b16 %v1400, %v1392
    %v1617 = vpack.c.b16 %v1401, %v1393
    %v1618 = vpack.c.b16 %v1402, %v1394
    %v1619 = vpack.c.b16 %v1403, %v1395
    %v1620 = vpack.c.b16 %v1404, %v1396
    %v1621 = vpack.c.b16 %v1405, %v1397
    %v1622 = vpack.c.b16 %v1414, %v1406
    %v1623 = vpack.c.b16 %v1415, %v1407
    %v1624 = vpack.c.b16 %v1416, %v1408
    %v1625 = vpack.c.b16 %v1417, %v1409
    %v1626 = vpack.c.b16 %v1418, %v1410
    %v1627 = vpack.c.b16 %v1419, %v1411
    %v1628 = vpack.c.b16 %v1420, %v1412
    %v1629 = vpack.c.b16 %v1421, %v1413
    %v1630 = vpack.c.b16 %v1430, %v1422
    %v1631 = vpack.c.b16 %v1431, %v1423
    %v1632 = vpack.c.b16 %v1432, %v1424
    %v1633 = vpack.c.b16 %v1433, %v1425
    %v1634 = vpack.c.b16 %v1434, %v1426
    %v1635 = vpack.c.b16 %v1435, %v1427
    %v1636 = vpack.c.b16 %v1436, %v1428
    %v1637 = vpack.c.b16 %v1437, %v1429
    %v1638 = vpack.c.b16 %v1446, %v1438
    %v1639 = vpack.c.b16 %v1447, %v1439
    %v1640 = vpack.c.b16 %v1448, %v1440
    %v1641 = vpack.c.b16 %v1449, %v1441
    %v1642 = vpack.c.b16 %v1450, %v1442
    %v1643 = vpack.c.b16 %v1451, %v1443
    %v1644 = vpack.c.b16 %v1452, %v1444
    %v1645 = vpack.c.b16 %v1453, %v1445
    %v1646 = vpack.c.b16 %v1462, %v1454
    %v1647 = vpack.c.b16 %v1463, %v1455
    %v1648 = vpack.c.b16 %v1464, %v1456
    %v1649 = vpack.c.b16 %v1465, %v1457
    %v1650 = vpack.c.b16 %v1466, %v1458
    %v1651 = vpack.c.b16 %v1467, %v1459
    %v1652 = vpack.c.b16 %v1468, %v1460
    %v1653 = vpack.c.b16 %v1469, %v1461
    %v1654 = vpack.c.b16 %v1478, %v1470
    %v1655 = vpack.c.b16 %v1479, %v1471
    %v1656 = vpack.c.b16 %v1480, %v1472
    %v1657 = vpack.c.b16 %v1481, %v1473
    %v1658 = vpack.c.b16 %v1482, %v1474
    %v1659 = vpack.c.b16 %v1483, %v1475
    %v1660 = vpack.c.b16 %v1484, %v1476
    %v1661 = vpack.c.b16 %v1485, %v1477
    %v1662 = vpack.c.b16 %v1494, %v1486
    %v1663 = vpack.c.b16 %v1495, %v1487
    %v1664 = vpack.c.b16 %v1496, %v1488
    %v1665 = vpack.c.b16 %v1497, %v1489
    %v1666 = vpack.c.b16 %v1498, %v1490
    %v1667 = vpack.c.b16 %v1499, %v1491
    %v1668 = vpack.c.b16 %v1500, %v1492
    %v1669 = vpack.c.b16 %v1501, %v1493
    %v1670 = vpack.c.b16 %v1510, %v1502
    %v1671 = vpack.c.b16 %v1511, %v1503
    %v1672 = vpack.c.b16 %v1512, %v1504
    %v1673 = vpack.c.b16 %v1513, %v1505
    %v1674 = vpack.c.b16 %v1514, %v1506
    %v1675 = vpack.c.b16 %v1515, %v1507
    %v1676 = vpack.c.b16 %v1516, %v1508
    %v1677 = vpack.c.b16 %v1517, %v1509
    %v1678 = vpack.c.b16 %v1526, %v1518
    %v1679 = vpack.c.b16 %v1527, %v1519
    %v1680 = vpack.c.b16 %v1528, %v1520
    %v1681 = vpack.c.b16 %v1529, %v1521
    %v1682 = vpack.c.b16 %v1530, %v1522
    %v1683 = vpack.c.b16 %v1531, %v1523
    %v1684 = vpack.c.b16 %v1532, %v1524
    %v1685 = vpack.c.b16 %v1533, %v1525
    %v1686 = vpack.c.b16 %v1542, %v1534
    %v1687 = vpack.c.b16 %v1543, %v1535
    %v1688 = vpack.c.b16 %v1544, %v1536
    %v1689 = vpack.c.b16 %v1545, %v1537
    %v1690 = vpack.c.b16 %v1546, %v1538
    %v1691 = vpack.c.b16 %v1547, %v1539
    %v1692 = vpack.c.b16 %v1548, %v1540
    %v1693 = vpack.c.b16 %v1549, %v1541
    %v1694 = vpack.c.b16 %v1558, %v1550
    %v1695 = vpack.c.b16 %v1559, %v1551
    %v1696 = vpack.c.b16 %v1560, %v1552
    %v1697 = vpack.c.b16 %v1561, %v1553
    %v1698 = vpack.c.b16 %v1562, %v1554
    %v1699 = vpack.c.b16 %v1563, %v1555
    %v1700 = vpack.c.b16 %v1564, %v1556
    %v1701 = vpack.c.b16 %v1565, %v1557
    %v1702 = vpack.c.b16 %v1574, %v1566
    %v1703 = vpack.c.b16 %v1575, %v1567
    %v1704 = vpack.c.b16 %v1576, %v1568
    %v1705 = vpack.c.b16 %v1577, %v1569
    %v1706 = vpack.c.b16 %v1578, %v1570
    %v1707 = vpack.c.b16 %v1579, %v1571
    %v1708 = vpack.c.b16 %v1580, %v1572
    %v1709 = vpack.c.b16 %v1581, %v1573
    %1838 = vmatprep.subr.bf16.mxu0 %v1583
    %1839 = vmatpush1.bf16.msra.mxu0 %v1582
    %1840 = vmatprep.subr.bf16.mxu0 %v1591
    %1841 = vmatpush1.bf16.msra.mxu0 %v1590
    %1842 = vmatprep.subr.bf16.mxu0 %v1599
    %1843 = vmatpush1.bf16.msra.mxu0 %v1598
    %1844 = vmatprep.subr.bf16.mxu0 %v1607
    %1845 = vmatpush1.bf16.msra.mxu0 %v1606
    %1846 = vmatprep.subr.bf16.mxu0 %v1615
    %1847 = vmatpush1.bf16.msra.mxu0 %v1614
    %1848 = vmatprep.subr.bf16.mxu0 %v1623
    %1849 = vmatpush1.bf16.msra.mxu0 %v1622
    %1850 = vmatprep.subr.bf16.mxu0 %v1631
    %1851 = vmatpush1.bf16.msra.mxu0 %v1630
    %1852 = vmatprep.subr.bf16.mxu0 %v1639
    %1853 = vmatpush1.bf16.msra.mxu0 %v1638
    %1854 = vmatprep.subr.bf16.mxu0 %v1647
    %1855 = vmatpush1.bf16.msra.mxu0 %v1646
    %1856 = vmatprep.subr.bf16.mxu0 %v1655
    %1857 = vmatpush1.bf16.msra.mxu0 %v1654
    %1858 = vmatprep.subr.bf16.mxu0 %v1663
    %1859 = vmatpush1.bf16.msra.mxu0 %v1662
    %1860 = vmatprep.subr.bf16.mxu0 %v1671
    %1861 = vmatpush1.bf16.msra.mxu0 %v1670
    %1862 = vmatprep.subr.bf16.mxu0 %v1679
    %1863 = vmatpush1.bf16.msra.mxu0 %v1678
    %1864 = vmatprep.subr.bf16.mxu0 %v1687
    %1865 = vmatpush1.bf16.msra.mxu0 %v1686
    %1866 = vmatprep.subr.bf16.mxu0 %v1695
    %1867 = vmatpush1.bf16.msra.mxu0 %v1694
    %1868 = vmatprep.subr.bf16.mxu0 %v1703
    %1869 = vmatpush1.bf16.msra.mxu0 %v1702
    %1870 = vmatprep.mubr.bf16.mxu0 %v1027
    %1871 = vmatmul.mubr.bf16.gmra.mrb[0].mxu0 %v1026
    %v1872 = vpop.f32.mrb[0].mxu0
    %v1873 = vadd.f32 %v1161, %v1872
    %v1874 = vpop.f32.mrb[0].mxu0
    %v1875 = vadd.f32 %v1165, %v1874
    %v1876 = vpop.f32.mrb[0].mxu0
    %v1877 = vpop.f32.mrb[0].mxu0
    %1878 = vdwg.mxu0
    %1879 = vmatprep.subr.bf16.mxu0 %v1585
    %1880 = vmatpush1.bf16.msra.mxu0 %v1584
    %1881 = vmatprep.subr.bf16.mxu0 %v1593
    %1882 = vmatpush1.bf16.msra.mxu0 %v1592
    %1883 = vmatprep.subr.bf16.mxu0 %v1601
    %1884 = vmatpush1.bf16.msra.mxu0 %v1600
    %1885 = vmatprep.subr.bf16.mxu0 %v1609
    %1886 = vmatpush1.bf16.msra.mxu0 %v1608
    %1887 = vmatprep.subr.bf16.mxu0 %v1617
    %1888 = vmatpush1.bf16.msra.mxu0 %v1616
    %1889 = vmatprep.subr.bf16.mxu0 %v1625
    %1890 = vmatpush1.bf16.msra.mxu0 %v1624
    %1891 = vmatprep.subr.bf16.mxu0 %v1633
    %1892 = vmatpush1.bf16.msra.mxu0 %v1632
    %1893 = vmatprep.subr.bf16.mxu0 %v1641
    %1894 = vmatpush1.bf16.msra.mxu0 %v1640
    %1895 = vmatprep.subr.bf16.mxu0 %v1649
    %1896 = vmatpush1.bf16.msra.mxu0 %v1648
    %1897 = vmatprep.subr.bf16.mxu0 %v1657
    %1898 = vmatpush1.bf16.msra.mxu0 %v1656
    %1899 = vmatprep.subr.bf16.mxu0 %v1665
    %1900 = vmatpush1.bf16.msra.mxu0 %v1664
    %1901 = vmatprep.subr.bf16.mxu0 %v1673
    %1902 = vmatpush1.bf16.msra.mxu0 %v1672
    %1903 = vmatprep.subr.bf16.mxu0 %v1681
    %1904 = vmatpush1.bf16.msra.mxu0 %v1680
    %1905 = vmatprep.subr.bf16.mxu0 %v1689
    %1906 = vmatpush1.bf16.msra.mxu0 %v1688
    %1907 = vmatprep.subr.bf16.mxu0 %v1697
    %1908 = vmatpush1.bf16.msra.mxu0 %v1696
    %1909 = vmatprep.subr.bf16.mxu0 %v1705
    %1910 = vmatpush1.bf16.msra.mxu0 %v1704
    %1911 = vmatprep.mubr.bf16.mxu0 %v1027
    %1912 = vmatmul.mubr.bf16.gmra.mrb[0].mxu0 %v1026
    %v1913 = vpop.f32.mrb[0].mxu0
    %v1914 = vadd.f32 %v1169, %v1913
    %v1915 = vpop.f32.mrb[0].mxu0
    %v1916 = vadd.f32 %v1173, %v1915
    %v1917 = vpop.f32.mrb[0].mxu0
    %v1918 = vpop.f32.mrb[0].mxu0
    %1919 = vdwg.mxu0
    %1920 = vmatprep.subr.bf16.mxu0 %v1587
    %1921 = vmatpush1.bf16.msra.mxu0 %v1586
    %1922 = vmatprep.subr.bf16.mxu0 %v1595
    %1923 = vmatpush1.bf16.msra.mxu0 %v1594
    %1924 = vmatprep.subr.bf16.mxu0 %v1603
    %1925 = vmatpush1.bf16.msra.mxu0 %v1602
    %1926 = vmatprep.subr.bf16.mxu0 %v1611
    %1927 = vmatpush1.bf16.msra.mxu0 %v1610
    %1928 = vmatprep.subr.bf16.mxu0 %v1619
    %1929 = vmatpush1.bf16.msra.mxu0 %v1618
    %1930 = vmatprep.subr.bf16.mxu0 %v1627
    %1931 = vmatpush1.bf16.msra.mxu0 %v1626
    %1932 = vmatprep.subr.bf16.mxu0 %v1635
    %1933 = vmatpush1.bf16.msra.mxu0 %v1634
    %1934 = vmatprep.subr.bf16.mxu0 %v1643
    %1935 = vmatpush1.bf16.msra.mxu0 %v1642
    %1936 = vmatprep.subr.bf16.mxu0 %v1651
    %1937 = vmatpush1.bf16.msra.mxu0 %v1650
    %1938 = vmatprep.subr.bf16.mxu0 %v1659
    %1939 = vmatpush1.bf16.msra.mxu0 %v1658
    %1940 = vmatprep.subr.bf16.mxu0 %v1667
    %1941 = vmatpush1.bf16.msra.mxu0 %v1666
    %1942 = vmatprep.subr.bf16.mxu0 %v1675
    %1943 = vmatpush1.bf16.msra.mxu0 %v1674
    %1944 = vmatprep.subr.bf16.mxu0 %v1683
    %1945 = vmatpush1.bf16.msra.mxu0 %v1682
    %1946 = vmatprep.subr.bf16.mxu0 %v1691
    %1947 = vmatpush1.bf16.msra.mxu0 %v1690
    %1948 = vmatprep.subr.bf16.mxu0 %v1699
    %1949 = vmatpush1.bf16.msra.mxu0 %v1698
    %1950 = vmatprep.subr.bf16.mxu0 %v1707
    %1951 = vmatpush1.bf16.msra.mxu0 %v1706
    %1952 = vmatprep.mubr.bf16.mxu0 %v1027
    %1953 = vmatmul.mubr.bf16.gmra.mrb[0].mxu0 %v1026
    %v1954 = vpop.f32.mrb[0].mxu0
    %v1955 = vadd.f32 %v1177, %v1954
    %v1956 = vpop.f32.mrb[0].mxu0
    %v1957 = vadd.f32 %v1181, %v1956
    %v1958 = vpop.f32.mrb[0].mxu0
    %v1959 = vpop.f32.mrb[0].mxu0
    %1960 = vdwg.mxu0
    %1961 = vmatprep.subr.bf16.mxu0 %v1589
    %1962 = vmatpush1.bf16.msra.mxu0 %v1588
    %1963 = vmatprep.subr.bf16.mxu0 %v1597
    %1964 = vmatpush1.bf16.msra.mxu0 %v1596
    %1965 = vmatprep.subr.bf16.mxu0 %v1605
    %1966 = vmatpush1.bf16.msra.mxu0 %v1604
    %1967 = vmatprep.subr.bf16.mxu0 %v1613
    %1968 = vmatpush1.bf16.msra.mxu0 %v1612
    %1969 = vmatprep.subr.bf16.mxu0 %v1621
    %1970 = vmatpush1.bf16.msra.mxu0 %v1620
    %1971 = vmatprep.subr.bf16.mxu0 %v1629
    %1972 = vmatpush1.bf16.msra.mxu0 %v1628
    %1973 = vmatprep.subr.bf16.mxu0 %v1637
    %1974 = vmatpush1.bf16.msra.mxu0 %v1636
    %1975 = vmatprep.subr.bf16.mxu0 %v1645
    %1976 = vmatpush1.bf16.msra.mxu0 %v1644
    %1977 = vmatprep.subr.bf16.mxu0 %v1653
    %1978 = vmatpush1.bf16.msra.mxu0 %v1652
    %1979 = vmatprep.subr.bf16.mxu0 %v1661
    %1980 = vmatpush1.bf16.msra.mxu0 %v1660
    %1981 = vmatprep.subr.bf16.mxu0 %v1669
    %1982 = vmatpush1.bf16.msra.mxu0 %v1668
    %1983 = vmatprep.subr.bf16.mxu0 %v1677
    %1984 = vmatpush1.bf16.msra.mxu0 %v1676
    %1985 = vmatprep.subr.bf16.mxu0 %v1685
    %1986 = vmatpush1.bf16.msra.mxu0 %v1684
    %1987 = vmatprep.subr.bf16.mxu0 %v1693
    %1988 = vmatpush1.bf16.msra.mxu0 %v1692
    %1989 = vmatprep.subr.bf16.mxu0 %v1701
    %1990 = vmatpush1.bf16.msra.mxu0 %v1700
    %1991 = vmatprep.subr.bf16.mxu0 %v1709
    %1992 = vmatpush1.bf16.msra.mxu0 %v1708
    %1993 = vmatprep.mubr.bf16.mxu0 %v1027
    %1994 = vmatmul.mubr.bf16.gmra.mrb[0].mxu0 %v1026
    %v1995 = vpop.f32.mrb[0].mxu0
    %v1996 = vadd.f32 %v1185, %v1995
    %v1997 = vpop.f32.mrb[0].mxu0
    %v1998 = vadd.f32 %v1189, %v1997
    %v1999 = vpop.f32.mrb[0].mxu0
    %v2000 = vpop.f32.mrb[0].mxu0
    %2001 = vdwg.mxu0
    %v2002 = vsub.f32 %v38, %v1873
    %v2003 = vsub.f32 %v39, %v1875
    %v2004 = vsub.f32 %v40, %v1914
    %v2005 = vsub.f32 %v41, %v1916
    %v2006 = vsub.f32 %v42, %v1955
    %v2007 = vsub.f32 %v43, %v1957
    %v2008 = vsub.f32 %v44, %v1996
    %v2009 = vsub.f32 %v45, %v1998
    %v2010 = vlaneseq
    %v2011 = vshrl.u32 %v2010, 7
    %vm2012 = vcmp.lt.s32.totalorder %v2011, 2
    %v2013 = vmul.f32 %v2002, %v2002
    %v2014 = vmul.f32 %v2003, %v2003
    %v2015 = vmul.f32 %v2004, %v2004
    %v2016 = vmul.f32 %v2005, %v2005
    %v2017 = vmul.f32 %v2006, %v2006
    %v2018 = vmul.f32 %v2007, %v2007
    %v2019 = vmul.f32 %v2008, %v2008
    %v2020 = vmul.f32 %v2009, %v2009
    %v2021 = vsel %vm2012, %v2013, 0.0
    %v2022 = vsel %vm2012, %v2014, 0.0
    %v2023 = vsel %vm2012, %v2015, 0.0
    %v2024 = vsel %vm2012, %v2016, 0.0
    %v2025 = vsel %vm2012, %v2017, 0.0
    %v2026 = vsel %vm2012, %v2018, 0.0
    %v2027 = vsel %vm2012, %v2019, 0.0
    %v2028 = vsel %vm2012, %v2020, 0.0
    %v2029 = vadd.f32 %v2021, %v2022
    %v2030 = vadd.f32 %v2029, %v2023
    %v2031 = vadd.f32 %v2030, %v2024
    %v2032 = vadd.f32 %v2031, %v2025
    %v2033 = vadd.f32 %v2032, %v2026
    %v2034 = vadd.f32 %v2033, %v2027
    %v2035 = vadd.f32 %v2034, %v2028
    %2036 = vadd.xlane.f32.xlu0 %v2035
    %v2037 = vpop.xlane.xlu0 %2036
    %v2038 = vrot.slane %v2037, 4
    %v2039 = vadd.f32 %v2037, %v2038
    %v2040 = vrot.slane %v2039, 2
    %v2041 = vadd.f32 %v2039, %v2040
    %v2042 = vrot.slane %v2041, 1
    %v2043 = vadd.f32 %v2041, %v2042
    %s2044 = vtos %v2043
    %s2045 = smul.f32 %s2044, 0.00048828125
    %s2046 = scalar_lea.smem [#allocation2], 0
    %2047 = sst [smem:[%s2046]] %s2045
    // Predicated region
    $region34: #{denoising_diffusion_forward.21} parent=1 // pred_check
      _
    $region35: #{denoising_diffusion_forward.21} parent=1 // pred_check_branch
      %2049 = sbr.rel (0) target = $region37
    $region36: #{denoising_diffusion_forward.21} parent=1 // pred_region
      %s2051 = ssub.s32 16, 16
      %2052 = vsyncadd [#allocation3], %s2051
      %2055 = dma.smem_to_hbm [#allocation2], 16, %s8, [#allocation3]
    $region37: #{denoising_diffusion_forward.21} parent=1 // pred_fallthru
      _
    // Predicated region
    $region38: #{denoising_diffusion_forward.21} parent=1 // pred_check
      _
    $region39: #{denoising_diffusion_forward.21} parent=1 // pred_check_branch
      %2057 = sbr.rel (0) target = $region41
    $region40: #{denoising_diffusion_forward.21} parent=1 // pred_region
      %2058 = dma.done [#allocation3], 16
    $region41: #{denoising_diffusion_forward.21} parent=1 // pred_fallthru
      _
    %2059 = sfence
    %2060 = vsyncpa [#allocation3], 1

</llo_original>
